<compile_context>
chip_gen: v6e
topology: v6e:2x2x1
jax: 0.10.0
libtpu: 0.0.40
codegen_flags: <defaults>
</compile_context>

<pallas_src>
import functools

import jax
import jax.numpy as jnp
from jax.experimental import pallas as pl
from jax.experimental.pallas import tpu as pltpu


LANE = 128
_MIB = 1024 * 1024


def _round_up(n, m):
    return ((n + m - 1) // m) * m


def _fused_gcn_kernel(adj_ref, x_hbm_ref, wt_ref, b_ref, o_ref,
                      h_ref, dma_sem, *, nlayers, pout):
    """One grid step == one GCN layer (grid=(nlayers,)).

    adj_ref:   (N, N)    bf16  VMEM, resident across all layers (single buffer)
    x_hbm_ref: (N, P)    f32   HBM (memory_space=ANY); DMA'd into h at layer 0
    wt_ref:    (P, P)    bf16  this layer's transposed, zero-padded weight
    b_ref:     (1, P)    f32   this layer's zero-padded bias
    o_ref:     (N, Pout) f32   padded output (written on the last layer only)
    h_ref:     (N, P)    f32   persistent VMEM scratch: current feature matrix
    dma_sem:   DMA semaphore for the one-shot x -> h copy
    """
    l = pl.program_id(0)

    @pl.when(l == 0)
    def _():
        # Pull the padded input features straight from HBM into the persistent
        # feature scratch; x never occupies its own resident VMEM buffer.
        cp = pltpu.make_async_copy(x_hbm_ref, h_ref, dma_sem)
        cp.start()
        cp.wait()

    # z = h @ W^T + b   (nn.Linear; bf16 MXU operands, f32 accumulation)
    z = jnp.dot(h_ref[...].astype(jnp.bfloat16), wt_ref[...],
                preferred_element_type=jnp.float32)
    z = z + b_ref[...]

    # out = adj @ z     (dense GCN propagation; bf16 MXU operands, f32 accum)
    out = jnp.dot(adj_ref[...], z.astype(jnp.bfloat16),
                  preferred_element_type=jnp.float32)

    @pl.when(l < nlayers - 1)
    def _():
        h_ref[...] = jnp.maximum(out, 0.0)          # ReLU, kept in f32

    @pl.when(l == nlayers - 1)
    def _():
        o_ref[...] = out[:, :pout]                  # only the output-layer lanes


def prepare_params(params, lane=LANE):
    """Zero-pad and stack per-layer (W [Fout,Fin], b [Fout]) into lane-dense
    tensors: W^T stacked as [L, P, P] (bf16), biases as [L, 1, P] (f32)."""
    dims = [params[0][0].shape[1]] + [w.shape[0] for w, _ in params]
    P = max(_round_up(d, lane) for d in dims)
    L = len(params)
    wt = jnp.zeros((L, P, P), jnp.float32)
    bb = jnp.zeros((L, 1, P), jnp.float32)
    for li, (w, b) in enumerate(params):
        fout, fin = w.shape
        wt = wt.at[li, :fin, :fout].set(w.T)
        bb = bb.at[li, 0, :fout].set(b)
    return wt.astype(jnp.bfloat16), bb, P


def _vmem_capacity_bytes():
    """Per-TensorCore VMEM capacity; conservative (v7x-sized) fallback."""
    try:
        cap = getattr(pltpu.get_tpu_info(), "vmem_capacity_bytes", None)
        if cap:
            return int(cap)
    except Exception:
        pass
    return 64 * _MIB


def _resident_spec(block_shape, index_map, single_buffer):
    """Constant-block-index operand: single VMEM buffer (double-buffering a
    block that never changes across the grid is pure VMEM waste)."""
    if single_buffer:
        return pl.BlockSpec(block_shape, index_map, pipeline_mode=pl.Buffered(1))
    return pl.BlockSpec(block_shape, index_map)


def gcn_c_forward(x, adj, params, *, lane=LANE, single_buffer_resident=True):
    """GCN_C.forward in eval mode (dropout / dropout_adj are identity)."""
    N, Fin = x.shape
    L = len(params)
    out_channels = params[-1][0].shape[0]

    wt, bb, P = prepare_params(params, lane)
    Pout = _round_up(out_channels, lane)      # output block sized to the output
                                              # layer, not to max(all dims)

    # adj is fed to the MXU in bf16; padded x stays f32 in HBM (DMA'd once,
    # directly into the f32 feature scratch inside the kernel).
    xp = jnp.zeros((N, P), jnp.float32).at[:, :Fin].set(x.astype(jnp.float32))
    adj_bf = adj.astype(jnp.bfloat16)

    # Rough resident VMEM footprint (bytes): adj and the output block are
    # single-buffered, the per-layer weights/bias are double-buffered so the
    # next layer's W prefetches behind the current layer's matmuls.
    vmem_est = (
        N * N * 2                      # adj (bf16), resident
        + 2 * (P * P * 2 + P * 4)      # per-layer W^T (bf16) + bias (f32)
        + N * Pout * 4                 # f32 output block, resident
        + N * P * 4                    # persistent f32 feature scratch h
    )
    if not single_buffer_resident:     # default double-buffering fallback
        vmem_est += N * N * 2 + N * Pout * 4

    # Generation-aware ceilings: v5e/v6e have 128 MiB VMEM, v7x 64 MiB per TC.
    vmem_cap = _vmem_capacity_bytes()
    vmem_limit_cap = min(vmem_cap * 7 // 8, 112 * _MIB)   # headroom for compiler scratch
    fused_ceiling = vmem_limit_cap - 16 * _MIB
    assert vmem_est <= fused_ceiling, (
        "fused GCN kernel keeps adj/h resident in VMEM; this graph is too "
        f"large for the fused path on this TPU generation (need ~{vmem_est >> 20} "
        f"MiB, ceiling {fused_ceiling >> 20} MiB). "
        "TODO(synk): use the row+K-tiled per-layer fallback for such graphs.")
    vmem_limit = int(min(max(2 * vmem_est, 32 * _MIB), vmem_limit_cap))

    out_padded = pl.pallas_call(
        functools.partial(_fused_gcn_kernel, nlayers=L, pout=Pout),
        out_shape=jax.ShapeDtypeStruct((N, Pout), jnp.float32),
        grid_spec=pltpu.PrefetchScalarGridSpec(
            num_scalar_prefetch=0,
            grid=(L,),
            in_specs=[
                # adj: constant block index -> resident, single-buffered.
                _resident_spec((N, N), lambda l: (0, 0), single_buffer_resident),
                # padded x: stays in HBM; DMA'd once into the h scratch.
                pl.BlockSpec(memory_space=pl.ANY),
                # layer-l W^T / bias: pipelined along the layer axis.
                pl.BlockSpec((None, P, P), lambda l: (l, 0, 0)),
                pl.BlockSpec((None, 1, P), lambda l: (l, 0, 0)),
            ],
            out_specs=_resident_spec((N, Pout), lambda l: (0, 0),
                                     single_buffer_resident),
            scratch_shapes=[
                pltpu.VMEM((N, P), jnp.float32),   # persistent f32 feature matrix
                pltpu.SemaphoreType.DMA,           # one-shot x -> h copy
            ],
        ),
        compiler_params=pltpu.CompilerParams(
            dimension_semantics=("arbitrary",),    # layers are sequential
            vmem_limit_bytes=vmem_limit,
        ),
    )(adj_bf, xp, wt, bb)

    return out_padded[:, :out_channels]


def init_params(key, nlayers, in_channels, hidden_channels, out_channels):
    """Deterministic synthetic init mirroring nn.Linear shapes."""
    dims = [in_channels] + [hidden_channels] * (nlayers - 1) + [out_channels]
    params = []
    for li in range(nlayers):
        fin, fout = dims[li], dims[li + 1]
        key, kw, kb = jax.random.split(key, 3)
        bound = 1.0 / (fin ** 0.5)
        w = jax.random.uniform(kw, (fout, fin), jnp.float32, -bound, bound)
        b = jax.random.uniform(kb, (fout,), jnp.float32, -bound, bound)
        params.append((w, b))
    return params


if __name__ == "__main__":
    # Small but TPU-tile-friendly shapes.
    N = 128              # number of graph nodes
    in_channels = 16
    hidden_channels = 32
    out_channels = 8
    nlayers = 3

    key = jax.random.PRNGKey(0)
    key, kx, ka = jax.random.split(key, 3)

    x = jax.random.normal(kx, (N, in_channels), jnp.float32)
    # Symmetric, row-normalized dense adjacency.
    a = jax.random.uniform(ka, (N, N), jnp.float32)
    adj = (a + a.T) * 0.5
    adj = adj / jnp.sum(adj, axis=-1, keepdims=True)

    params = init_params(key, nlayers, in_channels, hidden_channels, out_channels)

    try:
        fwd = jax.jit(functools.partial(gcn_c_forward, single_buffer_resident=True))
        out = jax.block_until_ready(fwd(x, adj, params))
    except Exception:
        # Fallback: default (double) buffering for the resident blocks if this
        # jax build rejects pl.Buffered(1); semantics are identical.
        fwd = jax.jit(functools.partial(gcn_c_forward, single_buffer_resident=False))
        out = jax.block_until_ready(fwd(x, adj, params))

    # Reference check in plain f32 JAX (same math; dropout is eval-mode
    # identity).  Tolerance loosened because the kernel feeds bf16 operands to
    # the MXU (accumulation and the carried features stay float32).
    ref = x
    for li, (w, b) in enumerate(params):
        ref = adj @ (ref @ w.T + b)
        if li != nlayers - 1:
            ref = jnp.maximum(ref, 0.0)

    assert out.shape == (N, out_channels)
    assert jnp.allclose(out, ref, atol=5e-2, rtol=5e-2), (
        float(jnp.max(jnp.abs(out - ref))))

    print("KERNEL_OK")
</pallas_src>

<mosaic_0001>
module attributes {stable_mosaic.version = 11 : i64} {
  func.func @_fused_gcn_kernel(%arg0: i32, %arg1: memref<128x128xbf16, #tpu.memory_space<vmem>>, %arg2: memref<128x128xf32, #tpu.memory_space<any>>, %arg3: memref<1x128x128xbf16, #tpu.memory_space<vmem>>, %arg4: memref<1x1x128xf32, #tpu.memory_space<vmem>>, %arg5: memref<128x128xf32, #tpu.memory_space<vmem>>, %arg6: memref<128x128xf32, #tpu.memory_space<vmem>>, %arg7: memref<!tpu.dma_semaphore, #tpu.memory_space<semaphore_mem>>) attributes {dimension_semantics = [#tpu.dimension_semantics<arbitrary>], iteration_bounds = array<i64: 3>, scalar_prefetch = 0 : i64, scratch_operands = 2 : i64, tpu.core_type = #tpu.core_type<tc>, window_params = [{pipeline_mode = #tpu.pipeline_mode<synchronous>, transform_indices = @transform_0, window_bounds = array<i64: 128, 128>}, {}, {transform_indices = @transform_2, window_bounds = array<i64: 1, 128, 128>}, {transform_indices = @transform_3, window_bounds = array<i64: 1, 1, 128>}, {pipeline_mode = #tpu.pipeline_mode<synchronous>, transform_indices = @transform_4, window_bounds = array<i64: 128, 128>}]} {
    %c0_i32 = arith.constant 0 : i32
    %0 = arith.cmpi eq, %arg0, %c0_i32 : i32
    %1 = arith.extui %0 : i1 to i32
    %c0_i32_0 = arith.constant 0 : i32
    %2 = arith.cmpi ne, %1, %c0_i32_0 : i32
    scf.if %2 {
      tpu.enqueue_dma source(%arg2 : memref<128x128xf32, #tpu.memory_space<any>>) target(%arg6 : memref<128x128xf32, #tpu.memory_space<vmem>>) target_semaphore(%arg7 : memref<!tpu.dma_semaphore, #tpu.memory_space<semaphore_mem>>)
      tpu.wait_dma2 semaphore(%arg7 : memref<!tpu.dma_semaphore, #tpu.memory_space<semaphore_mem>>) src(%arg2 : memref<128x128xf32, #tpu.memory_space<any>>) dst(%arg6 : memref<128x128xf32, #tpu.memory_space<vmem>>)
    } else {
    }
    %c0 = arith.constant 0 : index
    %c0_1 = arith.constant 0 : index
    %3 = vector.load %arg6[%c0, %c0_1] : memref<128x128xf32, #tpu.memory_space<vmem>>, vector<128x128xf32>
    %4 = arith.truncf %3 : vector<128x128xf32> to vector<128x128xbf16>
    %c0_2 = arith.constant 0 : index
    %c0_3 = arith.constant 0 : index
    %c0_4 = arith.constant 0 : index
    %5 = vector.load %arg3[%c0_2, %c0_3, %c0_4] : memref<1x128x128xbf16, #tpu.memory_space<vmem>>, vector<1x128x128xbf16>
    %6 = vector.shape_cast %5 : vector<1x128x128xbf16> to vector<128x128xbf16>
    %cst = arith.constant dense<0.000000e+00> : vector<128x128xf32>
    %7 = tpu.matmul %4, %6, %cst {dimension_numbers = #tpu.dot_dimension_numbers<[1], [0], [0], [1], [0, 0, 1, 1], [], []>} : vector<128x128xbf16>, vector<128x128xbf16>, vector<128x128xf32> -> vector<128x128xf32>
    %c0_5 = arith.constant 0 : index
    %c0_6 = arith.constant 0 : index
    %c0_7 = arith.constant 0 : index
    %8 = vector.load %arg4[%c0_5, %c0_6, %c0_7] : memref<1x1x128xf32, #tpu.memory_space<vmem>>, vector<1x1x128xf32>
    %9 = vector.shape_cast %8 : vector<1x1x128xf32> to vector<1x128xf32>
    %10 = vector.broadcast %9 : vector<1x128xf32> to vector<128x128xf32>
    %11 = arith.addf %7, %10 : vector<128x128xf32>
    %c0_8 = arith.constant 0 : index
    %c0_9 = arith.constant 0 : index
    %12 = vector.load %arg1[%c0_8, %c0_9] : memref<128x128xbf16, #tpu.memory_space<vmem>>, vector<128x128xbf16>
    %13 = arith.truncf %11 : vector<128x128xf32> to vector<128x128xbf16>
    %cst_10 = arith.constant dense<0.000000e+00> : vector<128x128xf32>
    %14 = tpu.matmul %12, %13, %cst_10 {dimension_numbers = #tpu.dot_dimension_numbers<[1], [0], [0], [1], [0, 0, 1, 1], [], []>} : vector<128x128xbf16>, vector<128x128xbf16>, vector<128x128xf32> -> vector<128x128xf32>
    %c2_i32 = arith.constant 2 : i32
    %15 = arith.cmpi slt, %arg0, %c2_i32 : i32
    %16 = arith.extui %15 : i1 to i32
    %c0_i32_11 = arith.constant 0 : i32
    %17 = arith.cmpi ne, %16, %c0_i32_11 : i32
    scf.if %17 {
      %cst_14 = arith.constant 0.000000e+00 : f32
      %21 = vector.broadcast %cst_14 : f32 to vector<128x128xf32>
      %22 = arith.maximumf %14, %21 : vector<128x128xf32>
      %c0_15 = arith.constant 0 : index
      %c0_16 = arith.constant 0 : index
      %23 = vector.load %arg6[%c0_15, %c0_16] : memref<128x128xf32, #tpu.memory_space<vmem>>, vector<128x128xf32>
      tpu.vector_store %arg6[%c0_15, %c0_16], %22 {strides = array<i32>} : memref<128x128xf32, #tpu.memory_space<vmem>>, vector<128x128xf32>,
    } else {
    }
    %c2_i32_12 = arith.constant 2 : i32
    %18 = arith.cmpi eq, %arg0, %c2_i32_12 : i32
    %19 = arith.extui %18 : i1 to i32
    %c0_i32_13 = arith.constant 0 : i32
    %20 = arith.cmpi ne, %19, %c0_i32_13 : i32
    scf.if %20 {
      %c0_14 = arith.constant 0 : index
      %c0_15 = arith.constant 0 : index
      %21 = vector.load %arg5[%c0_14, %c0_15] : memref<128x128xf32, #tpu.memory_space<vmem>>, vector<128x128xf32>
      tpu.vector_store %arg5[%c0_14, %c0_15], %14 {strides = array<i32>} : memref<128x128xf32, #tpu.memory_space<vmem>>, vector<128x128xf32>,
    } else {
    }
    return
  }
  func.func @transform_0(%arg0: i32) -> (i32, i32) {
    %c0_i32 = arith.constant 0 : i32
    %c0_i32_0 = arith.constant 0 : i32
    %c0_i32_1 = arith.constant 0 : i32
    return %c0_i32, %c0_i32_0 : i32, i32
  }
  func.func @transform_2(%arg0: i32) -> (i32, i32, i32) {
    %c0_i32 = arith.constant 0 : i32
    %c0_i32_0 = arith.constant 0 : i32
    %c0_i32_1 = arith.constant 0 : i32
    return %arg0, %c0_i32, %c0_i32_0 : i32, i32, i32
  }
  func.func @transform_3(%arg0: i32) -> (i32, i32, i32) {
    %c0_i32 = arith.constant 0 : i32
    %c0_i32_0 = arith.constant 0 : i32
    %c0_i32_1 = arith.constant 0 : i32
    return %arg0, %c0_i32, %c0_i32_0 : i32, i32, i32
  }
  func.func @transform_4(%arg0: i32) -> (i32, i32) {
    %c0_i32 = arith.constant 0 : i32
    %c0_i32_0 = arith.constant 0 : i32
    %c0_i32_1 = arith.constant 0 : i32
    return %c0_i32, %c0_i32_0 : i32, i32
  }
}

module attributes {stable_mosaic.version = 11 : i64} {
  func.func @_fused_gcn_kernel(%arg0: i32, %arg1: memref<128x128xbf16, #tpu.memory_space<vmem>>, %arg2: memref<128x128xf32, #tpu.memory_space<any>>, %arg3: memref<1x128x128xbf16, #tpu.memory_space<vmem>>, %arg4: memref<1x1x128xf32, #tpu.memory_space<vmem>>, %arg5: memref<128x128xf32, #tpu.memory_space<vmem>>, %arg6: memref<128x128xf32, #tpu.memory_space<vmem>>, %arg7: memref<!tpu.dma_semaphore, #tpu.memory_space<semaphore_mem>>) attributes {dimension_semantics = [#tpu.dimension_semantics<arbitrary>], iteration_bounds = array<i64: 3>, scalar_prefetch = 0 : i64, scratch_operands = 2 : i64, tpu.core_type = #tpu.core_type<tc>, window_params = [{pipeline_mode = #tpu.pipeline_mode<synchronous>, transform_indices = @transform_0, window_bounds = array<i64: 128, 128>}, {}, {transform_indices = @transform_2, window_bounds = array<i64: 1, 128, 128>}, {transform_indices = @transform_3, window_bounds = array<i64: 1, 1, 128>}, {pipeline_mode = #tpu.pipeline_mode<synchronous>, transform_indices = @transform_4, window_bounds = array<i64: 128, 128>}]} {
    %c0_i32 = arith.constant 0 : i32
    %0 = arith.cmpi eq, %arg0, %c0_i32 : i32
    %1 = arith.extui %0 : i1 to i32
    %c0_i32_0 = arith.constant 0 : i32
    %2 = arith.cmpi ne, %1, %c0_i32_0 : i32
    scf.if %2 {
      tpu.enqueue_dma source(%arg2 : memref<128x128xf32, #tpu.memory_space<any>>) target(%arg6 : memref<128x128xf32, #tpu.memory_space<vmem>>) target_semaphore(%arg7 : memref<!tpu.dma_semaphore, #tpu.memory_space<semaphore_mem>>)
      tpu.wait_dma2 semaphore(%arg7 : memref<!tpu.dma_semaphore, #tpu.memory_space<semaphore_mem>>) src(%arg2 : memref<128x128xf32, #tpu.memory_space<any>>) dst(%arg6 : memref<128x128xf32, #tpu.memory_space<vmem>>)
    } else {
    }
    %c0 = arith.constant 0 : index
    %c0_1 = arith.constant 0 : index
    %3 = vector.load %arg6[%c0, %c0_1] : memref<128x128xf32, #tpu.memory_space<vmem>>, vector<128x128xf32>
    %4 = arith.truncf %3 : vector<128x128xf32> to vector<128x128xbf16>
    %c0_2 = arith.constant 0 : index
    %c0_3 = arith.constant 0 : index
    %c0_4 = arith.constant 0 : index
    %5 = vector.load %arg3[%c0_2, %c0_3, %c0_4] : memref<1x128x128xbf16, #tpu.memory_space<vmem>>, vector<1x128x128xbf16>
    %6 = vector.shape_cast %5 : vector<1x128x128xbf16> to vector<128x128xbf16>
    %cst = arith.constant dense<0.000000e+00> : vector<128x128xf32>
    %7 = tpu.matmul %4, %6, %cst {dimension_numbers = #tpu.dot_dimension_numbers<[1], [0], [0], [1], [0, 0, 1, 1], [], []>} : vector<128x128xbf16>, vector<128x128xbf16>, vector<128x128xf32> -> vector<128x128xf32>
    %c0_5 = arith.constant 0 : index
    %c0_6 = arith.constant 0 : index
    %c0_7 = arith.constant 0 : index
    %8 = vector.load %arg4[%c0_5, %c0_6, %c0_7] : memref<1x1x128xf32, #tpu.memory_space<vmem>>, vector<1x1x128xf32>
    %9 = vector.shape_cast %8 : vector<1x1x128xf32> to vector<1x128xf32>
    %10 = vector.broadcast %9 : vector<1x128xf32> to vector<128x128xf32>
    %11 = arith.addf %7, %10 : vector<128x128xf32>
    %c0_8 = arith.constant 0 : index
    %c0_9 = arith.constant 0 : index
    %12 = vector.load %arg1[%c0_8, %c0_9] : memref<128x128xbf16, #tpu.memory_space<vmem>>, vector<128x128xbf16>
    %13 = arith.truncf %11 : vector<128x128xf32> to vector<128x128xbf16>
    %cst_10 = arith.constant dense<0.000000e+00> : vector<128x128xf32>
    %14 = tpu.matmul %12, %13, %cst_10 {dimension_numbers = #tpu.dot_dimension_numbers<[1], [0], [0], [1], [0, 0, 1, 1], [], []>} : vector<128x128xbf16>, vector<128x128xbf16>, vector<128x128xf32> -> vector<128x128xf32>
    %c2_i32 = arith.constant 2 : i32
    %15 = arith.cmpi slt, %arg0, %c2_i32 : i32
    %16 = arith.extui %15 : i1 to i32
    %c0_i32_11 = arith.constant 0 : i32
    %17 = arith.cmpi ne, %16, %c0_i32_11 : i32
    scf.if %17 {
      %cst_14 = arith.constant 0.000000e+00 : f32
      %21 = vector.broadcast %cst_14 : f32 to vector<128x128xf32>
      %22 = arith.maximumf %14, %21 : vector<128x128xf32>
      %c0_15 = arith.constant 0 : index
      %c0_16 = arith.constant 0 : index
      %23 = vector.load %arg6[%c0_15, %c0_16] : memref<128x128xf32, #tpu.memory_space<vmem>>, vector<128x128xf32>
      tpu.vector_store %arg6[%c0_15, %c0_16], %22 {strides = array<i32>} : memref<128x128xf32, #tpu.memory_space<vmem>>, vector<128x128xf32>,
    } else {
    }
    %c2_i32_12 = arith.constant 2 : i32
    %18 = arith.cmpi eq, %arg0, %c2_i32_12 : i32
    %19 = arith.extui %18 : i1 to i32
    %c0_i32_13 = arith.constant 0 : i32
    %20 = arith.cmpi ne, %19, %c0_i32_13 : i32
    scf.if %20 {
      %c0_14 = arith.constant 0 : index
      %c0_15 = arith.constant 0 : index
      %21 = vector.load %arg5[%c0_14, %c0_15] : memref<128x128xf32, #tpu.memory_space<vmem>>, vector<128x128xf32>
      tpu.vector_store %arg5[%c0_14, %c0_15], %14 {strides = array<i32>} : memref<128x128xf32, #tpu.memory_space<vmem>>, vector<128x128xf32>,
    } else {
    }
    return
  }
  func.func @transform_0(%arg0: i32) -> (i32, i32) {
    %c0_i32 = arith.constant 0 : i32
    %c0_i32_0 = arith.constant 0 : i32
    %c0_i32_1 = arith.constant 0 : i32
    return %c0_i32, %c0_i32_0 : i32, i32
  }
  func.func @transform_2(%arg0: i32) -> (i32, i32, i32) {
    %c0_i32 = arith.constant 0 : i32
    %c0_i32_0 = arith.constant 0 : i32
    %c0_i32_1 = arith.constant 0 : i32
    return %arg0, %c0_i32, %c0_i32_0 : i32, i32, i32
  }
  func.func @transform_3(%arg0: i32) -> (i32, i32, i32) {
    %c0_i32 = arith.constant 0 : i32
    %c0_i32_0 = arith.constant 0 : i32
    %c0_i32_1 = arith.constant 0 : i32
    return %arg0, %c0_i32, %c0_i32_0 : i32, i32, i32
  }
  func.func @transform_4(%arg0: i32) -> (i32, i32) {
    %c0_i32 = arith.constant 0 : i32
    %c0_i32_0 = arith.constant 0 : i32
    %c0_i32_1 = arith.constant 0 : i32
    return %c0_i32, %c0_i32_0 : i32, i32
  }
}

</mosaic_0001>

<llo_original>
// kernel: gcn_c_forward.1
$region0: #{gcn_c_forward.1}
  #allocation0 [shape = 'u32[]', space=smem, size = 0x4, offset = 0x4, fixed_abs, tag = 'smem constant byte address 0x4 - core index']
  #allocation1 [shape = 'u32[144,128]{1,0:T(1,128)}', space=vmem, size = 0x12000, scoped, tag = 'internal scratch']
  #allocation2 [shape = 'f32[128,128]{1,0:T(8,128)}', space=vmem, size = 0x10000, scoped, tag = 'scratch operand']
  #allocation3 [shape = 's32[1]{0}', space=sflag, size = 0x4, scoped, tag = 'scratch operand']
  #allocation4 [shape = 's32[]', space=sflag, size = 0x4, offset = 0, fixed_abs, tag = 'sflag constant byte address 0x0 - dummy sync flag']
  %s0 = inlined_call_operand.vmem [shape: bf16[128,128], index: 0, kind: input, shape index: {}]
  %s1 = inlined_call_operand.vmem [shape: f32[128,128], index: 1, kind: input, shape index: {}]
  %s2 = inlined_call_operand.vmem [shape: bf16[3,128,128], index: 2, kind: input, shape index: {}]
  %s3 = inlined_call_operand.vmem [shape: f32[3,1,128], index: 3, kind: input, shape index: {}]
  %s4 = inlined_call_operand.vmem [shape: f32[128,128], index: 4, kind: output, shape index: {}]
  %s5 = sld [smem:[#allocation0]]
  $region91: #{gcn_c_forward.1} parent=0
    _
  %s7 = ssub.s32 1, %s5
  %s8 = scalar_select 0, %s7, %s5
  loop: start=0, step=1, limit=5
  $region2: #{gcn_c_forward.1} parent=0 // loop_pre_header
    _
  $region3: #{gcn_c_forward.1} parent=0 // loop_header
    %s10 = sphi 0, %s14
    %p11 = scmp.ge.s32.totalorder %s10, 5
    %s18 = sphi 0, %s18
    %s20 = sphi 0, %s18
    %s21 = sphi 0, %s20
    %s35 = sphi 0, %s21
    %s41 = sphi 0, %s43
    %s44 = sphi 0, %s41
    %s45 = sphi 0, %s44
    %s61 = sphi 0, %s45
    %s67 = sphi 0, %s69
    %s70 = sphi 0, %s67
    %s71 = sphi 0, %s70
    %s87 = sphi 0, %s71
    %s91 = sphi 0, %s91
    %s93 = sphi 0, %s91
    %s94 = sphi 0, %s93
    %s108 = sphi 0, %s94
  $region4: #{gcn_c_forward.1} parent=0 // loop_header_branch
    %13 = sbr.rel (%p11) target = $region8
  $region5: #{gcn_c_forward.1} parent=0 // loop_body
    %s15 = ssub.s32 %s10, 1
    %s16 = ssub.s32 %s10, 2
    %s17 = sadd.s32 %s10, 1
    %s19 = sadd.s32 %s18, 1
    %p22 = scmp.eq.s32.totalorder %s10, 2
    %p23 = scmp.ne.s32.totalorder %s18, %s20
    %p24 = scmp.eq.s32.totalorder %s10, 0
    %p25 = por %p23, %p24
    %p26 = scmp.ne.s32.totalorder %s18, %s20
    %p27 = scmp.eq.s32.totalorder %s15, 2
    %p28 = por %p26, %p27
    %p29 = scmp.ne.s32.totalorder %s20, %s21
    %p30 = scmp.eq.s32.totalorder %s15, 0
    %p31 = por %p29, %p30
    %p32 = scmp.ne.s32.totalorder %s20, %s21
    %p33 = scmp.eq.s32.totalorder %s16, 2
    %p34 = por %p32, %p33
    %p36 = scmp.ne.s32.totalorder %s21, %s35
    %p37 = scmp.eq.s32.totalorder %s16, 0
    %p38 = por %p36, %p37
    %s39 = ssub.s32 %s10, %s17
    %p40 = scmp.eq.s32.totalorder %s39, 0
    %s42 = sadd.s32 %s41, 1
    %s43 = scalar_select %p40, %s41, %s42
    %p46 = pneg %p40
    %p47 = scmp.eq.s32.totalorder %s10, 2
    %p48 = por %p46, %p47
    %p49 = scmp.ne.s32.totalorder %s41, %s44
    %p50 = scmp.eq.s32.totalorder %s10, 0
    %p51 = por %p49, %p50
    %p52 = scmp.ne.s32.totalorder %s41, %s44
    %p53 = scmp.eq.s32.totalorder %s15, 2
    %p54 = por %p52, %p53
    %p55 = scmp.ne.s32.totalorder %s44, %s45
    %p56 = scmp.eq.s32.totalorder %s15, 0
    %p57 = por %p55, %p56
    %p58 = scmp.ne.s32.totalorder %s44, %s45
    %p59 = scmp.eq.s32.totalorder %s16, 2
    %p60 = por %p58, %p59
    %p62 = scmp.ne.s32.totalorder %s45, %s61
    %p63 = scmp.eq.s32.totalorder %s16, 0
    %p64 = por %p62, %p63
    %s65 = ssub.s32 %s10, %s17
    %p66 = scmp.eq.s32.totalorder %s65, 0
    %s68 = sadd.s32 %s67, 1
    %s69 = scalar_select %p66, %s67, %s68
    %p72 = pneg %p66
    %p73 = scmp.eq.s32.totalorder %s10, 2
    %p74 = por %p72, %p73
    %p75 = scmp.ne.s32.totalorder %s67, %s70
    %p76 = scmp.eq.s32.totalorder %s10, 0
    %p77 = por %p75, %p76
    %p78 = scmp.ne.s32.totalorder %s67, %s70
    %p79 = scmp.eq.s32.totalorder %s15, 2
    %p80 = por %p78, %p79
    %p81 = scmp.ne.s32.totalorder %s70, %s71
    %p82 = scmp.eq.s32.totalorder %s15, 0
    %p83 = por %p81, %p82
    %p84 = scmp.ne.s32.totalorder %s70, %s71
    %p85 = scmp.eq.s32.totalorder %s16, 2
    %p86 = por %p84, %p85
    %p88 = scmp.ne.s32.totalorder %s71, %s87
    %p89 = scmp.eq.s32.totalorder %s16, 0
    %p90 = por %p88, %p89
    %s92 = sadd.s32 %s91, 1
    %p95 = scmp.eq.s32.totalorder %s10, 2
    %p96 = scmp.ne.s32.totalorder %s91, %s93
    %p97 = scmp.eq.s32.totalorder %s10, 0
    %p98 = por %p96, %p97
    %p99 = scmp.ne.s32.totalorder %s91, %s93
    %p100 = scmp.eq.s32.totalorder %s15, 2
    %p101 = por %p99, %p100
    %p102 = scmp.ne.s32.totalorder %s93, %s94
    %p103 = scmp.eq.s32.totalorder %s15, 0
    %p104 = por %p102, %p103
    %p105 = scmp.ne.s32.totalorder %s93, %s94
    %p106 = scmp.eq.s32.totalorder %s16, 2
    %p107 = por %p105, %p106
    %p109 = scmp.ne.s32.totalorder %s94, %s108
    %p110 = scmp.eq.s32.totalorder %s16, 0
    %p111 = por %p109, %p110
    %p112 = scmp.le.s32.totalorder 1, %s10
    %p113 = scmp.lt.s32.totalorder %s10, 4
    %p114 = pnand %p112, %p113
    %p115 = pneg %p114
    // Predicated region
    $region9: #{gcn_c_forward.1} parent=5 // pred_check
      _
    $region10: #{gcn_c_forward.1} parent=5 // pred_check_branch
      %117 = sbr.rel (%p114) target = $region12
    $region11: #{gcn_c_forward.1} parent=5 // pred_region
      %s118 = ssub.s32 %s10, 1
      // Predicated region
      $region13: #{gcn_c_forward.1} parent=11 // pred_check
        %p119 = pneg %p31
      $region14: #{gcn_c_forward.1} parent=11 // pred_check_branch
        %121 = sbr.rel (%p119) target = $region16
      $region15: #{gcn_c_forward.1} parent=11 // pred_region
        _
      $region16: #{gcn_c_forward.1} parent=11 // pred_fallthru
        _
    $region12: #{gcn_c_forward.1} parent=5 // pred_fallthru
      _
    %p122 = scmp.lt.s32.totalorder %s10, 3
    // Predicated region
    $region17: #{gcn_c_forward.1} parent=5 // pred_check
      %p123 = pneg %p122
    $region18: #{gcn_c_forward.1} parent=5 // pred_check_branch
      %125 = sbr.rel (%p123) target = $region20
    $region19: #{gcn_c_forward.1} parent=5 // pred_region
      // Predicated region
      $region21: #{gcn_c_forward.1} parent=19 // pred_check
        %p126 = pneg %p51
      $region22: #{gcn_c_forward.1} parent=19 // pred_check_branch
        %128 = sbr.rel (%p126) target = $region24
      $region23: #{gcn_c_forward.1} parent=19 // pred_region
        %p129 = scmp.lt.s32.totalorder %s10, 2
        %s130 = scalar_select %p129, %s10, 2
        %s131 = smul.addr %s130, 16
        %s132 = smul.addr %s131, 4
        %s133 = scalar_lea.vmem %s2, %s132
      $region24: #{gcn_c_forward.1} parent=19 // pred_fallthru
        _
      // Predicated region
      $region25: #{gcn_c_forward.1} parent=19 // pred_check
        %p134 = pneg %p77
      $region26: #{gcn_c_forward.1} parent=19 // pred_check_branch
        %136 = sbr.rel (%p134) target = $region28
      $region27: #{gcn_c_forward.1} parent=19 // pred_region
        %p137 = scmp.lt.s32.totalorder %s10, 2
        %s138 = scalar_select %p137, %s10, 2
        %s139 = scalar_lea.vmem %s3, %s138
      $region28: #{gcn_c_forward.1} parent=19 // pred_fallthru
        _
    $region20: #{gcn_c_forward.1} parent=5 // pred_fallthru
      _
    %p140 = scmp.le.s32.totalorder 1, %s10
    %p141 = scmp.lt.s32.totalorder %s10, 4
    %p142 = pnand %p140, %p141
    %p143 = pneg %p142
    // Predicated region
    $region29: #{gcn_c_forward.1} parent=5 // pred_check
      _
    $region30: #{gcn_c_forward.1} parent=5 // pred_check_branch
      %145 = sbr.rel (%p142) target = $region32
    $region31: #{gcn_c_forward.1} parent=5 // pred_region
      %s146 = ssub.s32 %s10, 1
      %p147 = pneg %p31
      %p148 = pneg %p28
      %p149 = scmp.lt.s32.totalorder %s15, 2
      %s150 = scalar_select %p149, %s15, 2
      %s151 = smul.addr %s150, 16
      %s152 = smul.addr %s151, 4
      %s153 = scalar_lea.vmem %s2, %s152
      %p154 = pneg %p57
      %p155 = pneg %p54
      %p156 = scmp.lt.s32.totalorder %s15, 2
      %s157 = scalar_select %p156, %s15, 2
      %s158 = scalar_lea.vmem %s3, %s157
      %p159 = pneg %p83
      %p160 = pneg %p80
      %p161 = pneg %p104
      %p162 = pneg %p101
      %p163 = scmp.lt.s32.totalorder %s15, 2
      %s164 = scalar_select %p163, %s15, 2
      %s165 = smul.addr %s164, 16
      %s166 = smul.addr %s165, 4
      %s167 = scalar_lea.vmem %s2, %s166
      %p168 = scmp.lt.s32.totalorder %s15, 2
      %s169 = scalar_select %p168, %s15, 2
      %s170 = scalar_lea.vmem %s3, %s169
      %p172 = scmp.eq.s32.totalorder %s15, 0
      // Predicated region
      $region33: #{gcn_c_forward.1} parent=31 // pred_check
        %p173 = pneg %p172
      $region34: #{gcn_c_forward.1} parent=31 // pred_check_branch
        %175 = sbr.rel (%p173) target = $region36
      $region35: #{gcn_c_forward.1} parent=31 // pred_region
        %p177 = scmp.lt.u32.totalorder 128, 8
        %p178 = pneg %p177
        // Predicated region
        $region37: #{gcn_c_forward.1} parent=35 // pred_check
          _
        $region38: #{gcn_c_forward.1} parent=35 // pred_check_branch
          %180 = sbr.rel (%p177) target = $region40
        $region39: #{gcn_c_forward.1} parent=35 // pred_region
          %s196 = sand.u32 128, 7
          %p197 = scmp.eq.s32.totalorder %s196, 0
          // Predicated region
          $region52: #{gcn_c_forward.1} parent=39 // pred_check
            %p198 = pneg %p197
          $region53: #{gcn_c_forward.1} parent=39 // pred_check_branch
            %200 = sbr.rel (%p198) target = $region55
          $region54: #{gcn_c_forward.1} parent=39 // pred_region
            loop: start=0, step=1, limit=1
            $region56: #{gcn_c_forward.1} parent=54 // loop_pre_header
              _
            $region57: #{gcn_c_forward.1} parent=54 // loop_header
              %s202 = sphi 0, %s206
              %p203 = scmp.ge.s32.totalorder %s202, 1
              %s207 = sphi %s1, %s1
              %s208 = sphi [#allocation2], [#allocation2]
            $region58: #{gcn_c_forward.1} parent=54 // loop_header_branch
              %205 = sbr.rel (%p203) target = $region62
            $region59: #{gcn_c_forward.1} parent=54 // loop_body
              %v209 = vld [vmem:[%s207] sm:$0xff]
              %210 = vst [vmem:[%s208] sm:$0xff] %v209
              %v211 = vld [vmem:[%s207 + $0x8] sm:$0xff]
              %212 = vst [vmem:[%s208 + $0x8] sm:$0xff] %v211
              %v213 = vld [vmem:[%s207 + $0x10] sm:$0xff]
              %214 = vst [vmem:[%s208 + $0x10] sm:$0xff] %v213
              %v215 = vld [vmem:[%s207 + $0x18] sm:$0xff]
              %216 = vst [vmem:[%s208 + $0x18] sm:$0xff] %v215
              %v217 = vld [vmem:[%s207 + $0x20] sm:$0xff]
              %218 = vst [vmem:[%s208 + $0x20] sm:$0xff] %v217
              %v219 = vld [vmem:[%s207 + $0x28] sm:$0xff]
              %220 = vst [vmem:[%s208 + $0x28] sm:$0xff] %v219
              %v221 = vld [vmem:[%s207 + $0x30] sm:$0xff]
              %222 = vst [vmem:[%s208 + $0x30] sm:$0xff] %v221
              %v223 = vld [vmem:[%s207 + $0x38] sm:$0xff]
              %224 = vst [vmem:[%s208 + $0x38] sm:$0xff] %v223
              %v225 = vld [vmem:[%s207 + $0x40] sm:$0xff]
              %226 = vst [vmem:[%s208 + $0x40] sm:$0xff] %v225
              %v227 = vld [vmem:[%s207 + $0x48] sm:$0xff]
              %228 = vst [vmem:[%s208 + $0x48] sm:$0xff] %v227
              %v229 = vld [vmem:[%s207 + $0x50] sm:$0xff]
              %230 = vst [vmem:[%s208 + $0x50] sm:$0xff] %v229
              %v231 = vld [vmem:[%s207 + $0x58] sm:$0xff]
              %232 = vst [vmem:[%s208 + $0x58] sm:$0xff] %v231
              %v233 = vld [vmem:[%s207 + $0x60] sm:$0xff]
              %234 = vst [vmem:[%s208 + $0x60] sm:$0xff] %v233
              %v235 = vld [vmem:[%s207 + $0x68] sm:$0xff]
              %236 = vst [vmem:[%s208 + $0x68] sm:$0xff] %v235
              %v237 = vld [vmem:[%s207 + $0x70] sm:$0xff]
              %238 = vst [vmem:[%s208 + $0x70] sm:$0xff] %v237
              %v239 = vld [vmem:[%s207 + $0x78] sm:$0xff]
              %240 = vst [vmem:[%s208 + $0x78] sm:$0xff] %v239
            $region60: #{gcn_c_forward.1} parent=54 // loop_footer
              %s206 = sadd.s32 1, %s202
            $region61: #{gcn_c_forward.1} parent=54 // loop_footer_branch
              %201 = sbr.rel target = $region57
            $region62: #{gcn_c_forward.1} parent=54 // loop_exit
              _
          $region55: #{gcn_c_forward.1} parent=39 // pred_fallthru
            _
          %p241 = pneg %p197
          // Predicated region
          $region63: #{gcn_c_forward.1} parent=39 // pred_check
            _
          $region64: #{gcn_c_forward.1} parent=39 // pred_check_branch
            %243 = sbr.rel (%p197) target = $region66
          $region65: #{gcn_c_forward.1} parent=39 // pred_region
            %s244 = sand.u32 128, 7
          $region66: #{gcn_c_forward.1} parent=39 // pred_fallthru
            _
        $region40: #{gcn_c_forward.1} parent=35 // pred_fallthru
          _
        // Predicated region
        $region41: #{gcn_c_forward.1} parent=35 // pred_check
          %p181 = pneg %p177
        $region42: #{gcn_c_forward.1} parent=35 // pred_check_branch
          %183 = sbr.rel (%p181) target = $region44
        $region43: #{gcn_c_forward.1} parent=35 // pred_region
          %s184 = sshll.u32 1, 128
          %s185 = ssub.s32 %s184, 1
          loop: start=0, step=1, limit=1
          $region45: #{gcn_c_forward.1} parent=43 // loop_pre_header
            _
          $region46: #{gcn_c_forward.1} parent=43 // loop_header
            %s187 = sphi 0, %s191
            %p188 = scmp.ge.s32.totalorder %s187, 1
            %s192 = sphi %s1, %s1
            %s193 = sphi [#allocation2], [#allocation2]
          $region47: #{gcn_c_forward.1} parent=43 // loop_header_branch
            %190 = sbr.rel (%p188) target = $region51
          $region48: #{gcn_c_forward.1} parent=43 // loop_body
            %v194 = vld [vmem:[%s192] sm:%s185]
            %195 = vst [vmem:[%s193] sm:%s185] %v194
          $region49: #{gcn_c_forward.1} parent=43 // loop_footer
            %s191 = sadd.s32 1, %s187
          $region50: #{gcn_c_forward.1} parent=43 // loop_footer_branch
            %186 = sbr.rel target = $region46
          $region51: #{gcn_c_forward.1} parent=43 // loop_exit
            _
        $region44: #{gcn_c_forward.1} parent=35 // pred_fallthru
          _
        // Predicated region
        $region67: #{gcn_c_forward.1} parent=35 // pred_check
          _
        $region68: #{gcn_c_forward.1} parent=35 // pred_check_branch
          %247 = sbr.rel (0) target = $region70
        $region69: #{gcn_c_forward.1} parent=35 // pred_region
          %248 = vsyncadd [#allocation3], 2048
        $region70: #{gcn_c_forward.1} parent=35 // pred_fallthru
          _
        %s249 = smul.u32 128, 1
        %s250 = sshll.u32 %s249, 4
        %251 = dma.done [#allocation3], %s250
      $region36: #{gcn_c_forward.1} parent=31 // pred_fallthru
        _
      %v252 = vld [vmem:[#allocation2] sm:$0xff]
      %v253 = vld [vmem:[#allocation2 + $0x8] sm:$0xff]
      %v254 = vld [vmem:[#allocation2 + $0x10] sm:$0xff]
      %v255 = vld [vmem:[#allocation2 + $0x18] sm:$0xff]
      %v256 = vld [vmem:[#allocation2 + $0x20] sm:$0xff]
      %v257 = vld [vmem:[#allocation2 + $0x28] sm:$0xff]
      %v258 = vld [vmem:[#allocation2 + $0x30] sm:$0xff]
      %v259 = vld [vmem:[#allocation2 + $0x38] sm:$0xff]
      %v260 = vld [vmem:[#allocation2 + $0x40] sm:$0xff]
      %v261 = vld [vmem:[#allocation2 + $0x48] sm:$0xff]
      %v262 = vld [vmem:[#allocation2 + $0x50] sm:$0xff]
      %v263 = vld [vmem:[#allocation2 + $0x58] sm:$0xff]
      %v264 = vld [vmem:[#allocation2 + $0x60] sm:$0xff]
      %v265 = vld [vmem:[#allocation2 + $0x68] sm:$0xff]
      %v266 = vld [vmem:[#allocation2 + $0x70] sm:$0xff]
      %v267 = vld [vmem:[#allocation2 + $0x78] sm:$0xff]
      %v268 = vpack.c.bf16 %v253, %v252
      %v269 = vpack.c.bf16 %v255, %v254
      %v270 = vpack.c.bf16 %v257, %v256
      %v271 = vpack.c.bf16 %v259, %v258
      %v272 = vpack.c.bf16 %v261, %v260
      %v273 = vpack.c.bf16 %v263, %v262
      %v274 = vpack.c.bf16 %v265, %v264
      %v275 = vpack.c.bf16 %v267, %v266
      %v276 = vld [vmem:[%s167] sm:$0xf]
      %v277 = vld [vmem:[%s167 + $0x4] sm:$0xf]
      %v278 = vld [vmem:[%s167 + $0x8] sm:$0xf]
      %v279 = vld [vmem:[%s167 + $0xc] sm:$0xf]
      %v280 = vld [vmem:[%s167 + $0x10] sm:$0xf]
      %v281 = vld [vmem:[%s167 + $0x14] sm:$0xf]
      %v282 = vld [vmem:[%s167 + $0x18] sm:$0xf]
      %v283 = vld [vmem:[%s167 + $0x1c] sm:$0xf]
      %v284 = vld [vmem:[%s167 + $0x20] sm:$0xf]
      %v285 = vld [vmem:[%s167 + $0x24] sm:$0xf]
      %v286 = vld [vmem:[%s167 + $0x28] sm:$0xf]
      %v287 = vld [vmem:[%s167 + $0x2c] sm:$0xf]
      %v288 = vld [vmem:[%s167 + $0x30] sm:$0xf]
      %v289 = vld [vmem:[%s167 + $0x34] sm:$0xf]
      %v290 = vld [vmem:[%s167 + $0x38] sm:$0xf]
      %v291 = vld [vmem:[%s167 + $0x3c] sm:$0xf]
      %v292 = vld [vmem:[%s170] sm:$0x1]
      %v294 = vlaneseq
      %v295 = vshrl.u32 %v294, 7
      %v296 = vsub.s32 0, %v295
      %v297 = vrot.slane %v292, %v296
      %v315 = vunpack.c.l.b16 %v276
      %v316 = vunpack.c.l.b16 %v277
      %v317 = vunpack.c.l.b16 %v278
      %v318 = vunpack.c.l.b16 %v279
      %v319 = vunpack.c.l.b16 %v280
      %v320 = vunpack.c.l.b16 %v281
      %v321 = vunpack.c.l.b16 %v282
      %v322 = vunpack.c.l.b16 %v283
      %v323 = vunpack.c.l.b16 %v284
      %v324 = vunpack.c.l.b16 %v285
      %v325 = vunpack.c.l.b16 %v286
      %v326 = vunpack.c.l.b16 %v287
      %v327 = vunpack.c.l.b16 %v288
      %v328 = vunpack.c.l.b16 %v289
      %v329 = vunpack.c.l.b16 %v290
      %v330 = vunpack.c.l.b16 %v291
      %v331 = vpack.c.b16 %v316, %v315
      %v332 = vpack.c.b16 %v318, %v317
      %v333 = vpack.c.b16 %v320, %v319
      %v334 = vpack.c.b16 %v322, %v321
      %v335 = vpack.c.b16 %v324, %v323
      %v336 = vpack.c.b16 %v326, %v325
      %v337 = vpack.c.b16 %v328, %v327
      %v338 = vpack.c.b16 %v330, %v329
      %347 = vmatprep.subr.bf16.mxu0 0
      %348 = vmatpush1.bf16.msra.mxu0 %v338
      %349 = vmatprep.subr.bf16.mxu0 0
      %350 = vmatpush1.bf16.msra.mxu0 %v337
      %351 = vmatprep.subr.bf16.mxu0 0
      %352 = vmatpush1.bf16.msra.mxu0 %v336
      %353 = vmatprep.subr.bf16.mxu0 0
      %354 = vmatpush1.bf16.msra.mxu0 %v335
      %355 = vmatprep.subr.bf16.mxu0 0
      %356 = vmatpush1.bf16.msra.mxu0 %v334
      %357 = vmatprep.subr.bf16.mxu0 0
      %358 = vmatpush1.bf16.msra.mxu0 %v333
      %359 = vmatprep.subr.bf16.mxu0 0
      %360 = vmatpush1.bf16.msra.mxu0 %v332
      %361 = vmatprep.subr.bf16.mxu0 0
      %362 = vmatpush1.bf16.msra.mxu0 %v331
      %363 = vmatprep.subr.bf16.mxu0 0
      %364 = vmatpush2.bf16.msra.mxu0 0
      %365 = vmatprep.subr.bf16.mxu0 0
      %366 = vmatpush2.bf16.msra.mxu0 0
      %367 = vmatprep.subr.bf16.mxu0 0
      %368 = vmatpush2.bf16.msra.mxu0 0
      %369 = vmatprep.subr.bf16.mxu0 0
      %370 = vmatpush2.bf16.msra.mxu0 0
      %371 = vmatprep.subr.bf16.mxu0 0
      %372 = vmatpush2.bf16.msra.mxu0 0
      %373 = vmatprep.subr.bf16.mxu0 0
      %374 = vmatpush2.bf16.msra.mxu0 0
      %375 = vmatprep.subr.bf16.mxu0 0
      %376 = vmatpush2.bf16.msra.mxu0 0
      %377 = vmatprep.subr.bf16.mxu0 0
      %378 = vmatpush2.bf16.msra.mxu0 0
      %379 = vmatprep.mubr.bf16.mxu0 0
      %380 = vmatmul.mubr.bf16.gmra.mxu0 %v268
      %v381 = vpop.f32.mrf.mxu0
      %v382 = vadd.f32 %v297, %v381
      %v383 = vpop.f32.mrf.mxu0
      %v384 = vpop.f32.mrf.mxu0
      %v385 = vadd.f32 %v297, %v384
      %v386 = vpop.f32.mrf.mxu0
      %387 = vmatprep.mubr.bf16.mxu0 0
      %388 = vmatmul.mubr.bf16.gmra.mxu0 %v269
      %v389 = vpop.f32.mrf.mxu0
      %v390 = vadd.f32 %v297, %v389
      %v391 = vpop.f32.mrf.mxu0
      %v392 = vpop.f32.mrf.mxu0
      %v393 = vadd.f32 %v297, %v392
      %v394 = vpop.f32.mrf.mxu0
      %395 = vmatprep.mubr.bf16.mxu0 0
      %396 = vmatmul.mubr.bf16.gmra.mxu0 %v270
      %v397 = vpop.f32.mrf.mxu0
      %v398 = vadd.f32 %v297, %v397
      %v399 = vpop.f32.mrf.mxu0
      %v400 = vpop.f32.mrf.mxu0
      %v401 = vadd.f32 %v297, %v400
      %v402 = vpop.f32.mrf.mxu0
      %403 = vmatprep.mubr.bf16.mxu0 0
      %404 = vmatmul.mubr.bf16.gmra.mxu0 %v271
      %v405 = vpop.f32.mrf.mxu0
      %v406 = vadd.f32 %v297, %v405
      %v407 = vpop.f32.mrf.mxu0
      %v408 = vpop.f32.mrf.mxu0
      %v409 = vadd.f32 %v297, %v408
      %v410 = vpop.f32.mrf.mxu0
      %411 = vmatprep.mubr.bf16.mxu0 0
      %412 = vmatmul.mubr.bf16.gmra.mxu0 %v272
      %v413 = vpop.f32.mrf.mxu0
      %v414 = vadd.f32 %v297, %v413
      %v415 = vpop.f32.mrf.mxu0
      %v416 = vpop.f32.mrf.mxu0
      %v417 = vadd.f32 %v297, %v416
      %v418 = vpop.f32.mrf.mxu0
      %419 = vmatprep.mubr.bf16.mxu0 0
      %420 = vmatmul.mubr.bf16.gmra.mxu0 %v273
      %v421 = vpop.f32.mrf.mxu0
      %v422 = vadd.f32 %v297, %v421
      %v423 = vpop.f32.mrf.mxu0
      %v424 = vpop.f32.mrf.mxu0
      %v425 = vadd.f32 %v297, %v424
      %v426 = vpop.f32.mrf.mxu0
      %427 = vmatprep.mubr.bf16.mxu0 0
      %428 = vmatmul.mubr.bf16.gmra.mxu0 %v274
      %v429 = vpop.f32.mrf.mxu0
      %v430 = vadd.f32 %v297, %v429
      %v431 = vpop.f32.mrf.mxu0
      %v432 = vpop.f32.mrf.mxu0
      %v433 = vadd.f32 %v297, %v432
      %v434 = vpop.f32.mrf.mxu0
      %435 = vmatprep.mubr.bf16.mxu0 0
      %436 = vmatmul.mubr.bf16.gmra.mxu0 %v275
      %v437 = vpop.f32.mrf.mxu0
      %v438 = vadd.f32 %v297, %v437
      %v439 = vpop.f32.mrf.mxu0
      %v440 = vpop.f32.mrf.mxu0
      %v441 = vadd.f32 %v297, %v440
      %v442 = vpop.f32.mrf.mxu0
      %443 = vdwg.mxu0
      %v444 = vld [vmem:[%s0] sm:$0xf]
      %v445 = vld [vmem:[%s0 + $0x4] sm:$0xf]
      %v446 = vld [vmem:[%s0 + $0x8] sm:$0xf]
      %v447 = vld [vmem:[%s0 + $0xc] sm:$0xf]
      %v448 = vld [vmem:[%s0 + $0x10] sm:$0xf]
      %v449 = vld [vmem:[%s0 + $0x14] sm:$0xf]
      %v450 = vld [vmem:[%s0 + $0x18] sm:$0xf]
      %v451 = vld [vmem:[%s0 + $0x1c] sm:$0xf]
      %v452 = vld [vmem:[%s0 + $0x20] sm:$0xf]
      %v453 = vld [vmem:[%s0 + $0x24] sm:$0xf]
      %v454 = vld [vmem:[%s0 + $0x28] sm:$0xf]
      %v455 = vld [vmem:[%s0 + $0x2c] sm:$0xf]
      %v456 = vld [vmem:[%s0 + $0x30] sm:$0xf]
      %v457 = vld [vmem:[%s0 + $0x34] sm:$0xf]
      %v458 = vld [vmem:[%s0 + $0x38] sm:$0xf]
      %v459 = vld [vmem:[%s0 + $0x3c] sm:$0xf]
      %v460 = vpack.c.bf16 %v385, %v382
      %v461 = vpack.c.bf16 %v393, %v390
      %v462 = vpack.c.bf16 %v401, %v398
      %v463 = vpack.c.bf16 %v409, %v406
      %v464 = vpack.c.bf16 %v417, %v414
      %v465 = vpack.c.bf16 %v425, %v422
      %v466 = vpack.c.bf16 %v433, %v430
      %v467 = vpack.c.bf16 %v441, %v438
      %v484 = vunpack.c.l.b16 %v444
      %v485 = vunpack.c.l.b16 %v445
      %v486 = vunpack.c.l.b16 %v446
      %v487 = vunpack.c.l.b16 %v447
      %v488 = vunpack.c.l.b16 %v448
      %v489 = vunpack.c.l.b16 %v449
      %v490 = vunpack.c.l.b16 %v450
      %v491 = vunpack.c.l.b16 %v451
      %v492 = vunpack.c.l.b16 %v452
      %v493 = vunpack.c.l.b16 %v453
      %v494 = vunpack.c.l.b16 %v454
      %v495 = vunpack.c.l.b16 %v455
      %v496 = vunpack.c.l.b16 %v456
      %v497 = vunpack.c.l.b16 %v457
      %v498 = vunpack.c.l.b16 %v458
      %v499 = vunpack.c.l.b16 %v459
      %v500 = vpack.c.b16 %v485, %v484
      %v501 = vpack.c.b16 %v487, %v486
      %v502 = vpack.c.b16 %v489, %v488
      %v503 = vpack.c.b16 %v491, %v490
      %v504 = vpack.c.b16 %v493, %v492
      %v505 = vpack.c.b16 %v495, %v494
      %v506 = vpack.c.b16 %v497, %v496
      %v507 = vpack.c.b16 %v499, %v498
      %516 = vmatprep.subr.bf16.mxu0 0
      %517 = vmatpush1.bf16.msra.mxu0 %v467
      %518 = vmatprep.subr.bf16.mxu0 0
      %519 = vmatpush1.bf16.msra.mxu0 %v466
      %520 = vmatprep.subr.bf16.mxu0 0
      %521 = vmatpush1.bf16.msra.mxu0 %v465
      %522 = vmatprep.subr.bf16.mxu0 0
      %523 = vmatpush1.bf16.msra.mxu0 %v464
      %524 = vmatprep.subr.bf16.mxu0 0
      %525 = vmatpush1.bf16.msra.mxu0 %v463
      %526 = vmatprep.subr.bf16.mxu0 0
      %527 = vmatpush1.bf16.msra.mxu0 %v462
      %528 = vmatprep.subr.bf16.mxu0 0
      %529 = vmatpush1.bf16.msra.mxu0 %v461
      %530 = vmatprep.subr.bf16.mxu0 0
      %531 = vmatpush1.bf16.msra.mxu0 %v460
      %532 = vmatprep.subr.bf16.mxu0 0
      %533 = vmatpush2.bf16.msra.mxu0 0
      %534 = vmatprep.subr.bf16.mxu0 0
      %535 = vmatpush2.bf16.msra.mxu0 0
      %536 = vmatprep.subr.bf16.mxu0 0
      %537 = vmatpush2.bf16.msra.mxu0 0
      %538 = vmatprep.subr.bf16.mxu0 0
      %539 = vmatpush2.bf16.msra.mxu0 0
      %540 = vmatprep.subr.bf16.mxu0 0
      %541 = vmatpush2.bf16.msra.mxu0 0
      %542 = vmatprep.subr.bf16.mxu0 0
      %543 = vmatpush2.bf16.msra.mxu0 0
      %544 = vmatprep.subr.bf16.mxu0 0
      %545 = vmatpush2.bf16.msra.mxu0 0
      %546 = vmatprep.subr.bf16.mxu0 0
      %547 = vmatpush2.bf16.msra.mxu0 0
      %548 = vmatprep.mubr.bf16.mxu0 0
      %549 = vmatmul.mubr.bf16.gmra.mxu0 %v500
      %v550 = vpop.f32.mrf.mxu0
      %v551 = vadd.f32 0.0, %v550
      %v552 = vpop.f32.mrf.mxu0
      %v553 = vpop.f32.mrf.mxu0
      %v554 = vadd.f32 0.0, %v553
      %v555 = vpop.f32.mrf.mxu0
      %556 = vmatprep.mubr.bf16.mxu0 0
      %557 = vmatmul.mubr.bf16.gmra.mxu0 %v501
      %v558 = vpop.f32.mrf.mxu0
      %v559 = vadd.f32 0.0, %v558
      %v560 = vpop.f32.mrf.mxu0
      %v561 = vpop.f32.mrf.mxu0
      %v562 = vadd.f32 0.0, %v561
      %v563 = vpop.f32.mrf.mxu0
      %564 = vmatprep.mubr.bf16.mxu0 0
      %565 = vmatmul.mubr.bf16.gmra.mxu0 %v502
      %v566 = vpop.f32.mrf.mxu0
      %v567 = vadd.f32 0.0, %v566
      %v568 = vpop.f32.mrf.mxu0
      %v569 = vpop.f32.mrf.mxu0
      %v570 = vadd.f32 0.0, %v569
      %v571 = vpop.f32.mrf.mxu0
      %572 = vmatprep.mubr.bf16.mxu0 0
      %573 = vmatmul.mubr.bf16.gmra.mxu0 %v503
      %v574 = vpop.f32.mrf.mxu0
      %v575 = vadd.f32 0.0, %v574
      %v576 = vpop.f32.mrf.mxu0
      %v577 = vpop.f32.mrf.mxu0
      %v578 = vadd.f32 0.0, %v577
      %v579 = vpop.f32.mrf.mxu0
      %580 = vmatprep.mubr.bf16.mxu0 0
      %581 = vmatmul.mubr.bf16.gmra.mxu0 %v504
      %v582 = vpop.f32.mrf.mxu0
      %v583 = vadd.f32 0.0, %v582
      %v584 = vpop.f32.mrf.mxu0
      %v585 = vpop.f32.mrf.mxu0
      %v586 = vadd.f32 0.0, %v585
      %v587 = vpop.f32.mrf.mxu0
      %588 = vmatprep.mubr.bf16.mxu0 0
      %589 = vmatmul.mubr.bf16.gmra.mxu0 %v505
      %v590 = vpop.f32.mrf.mxu0
      %v591 = vadd.f32 0.0, %v590
      %v592 = vpop.f32.mrf.mxu0
      %v593 = vpop.f32.mrf.mxu0
      %v594 = vadd.f32 0.0, %v593
      %v595 = vpop.f32.mrf.mxu0
      %596 = vmatprep.mubr.bf16.mxu0 0
      %597 = vmatmul.mubr.bf16.gmra.mxu0 %v506
      %v598 = vpop.f32.mrf.mxu0
      %v599 = vadd.f32 0.0, %v598
      %v600 = vpop.f32.mrf.mxu0
      %v601 = vpop.f32.mrf.mxu0
      %v602 = vadd.f32 0.0, %v601
      %v603 = vpop.f32.mrf.mxu0
      %604 = vmatprep.mubr.bf16.mxu0 0
      %605 = vmatmul.mubr.bf16.gmra.mxu0 %v507
      %v606 = vpop.f32.mrf.mxu0
      %v607 = vadd.f32 0.0, %v606
      %v608 = vpop.f32.mrf.mxu0
      %v609 = vpop.f32.mrf.mxu0
      %v610 = vadd.f32 0.0, %v609
      %v611 = vpop.f32.mrf.mxu0
      %612 = vdwg.mxu0
      %p613 = scmp.lt.s32.totalorder %s15, 2
      // Predicated region
      $region71: #{gcn_c_forward.1} parent=31 // pred_check
        %p614 = pneg %p613
      $region72: #{gcn_c_forward.1} parent=31 // pred_check_branch
        %616 = sbr.rel (%p614) target = $region74
      $region73: #{gcn_c_forward.1} parent=31 // pred_region
        %v617 = vmax.f32 %v551, 0.0
        %v618 = vmax.f32 %v554, 0.0
        %v619 = vmax.f32 %v559, 0.0
        %v620 = vmax.f32 %v562, 0.0
        %v621 = vmax.f32 %v567, 0.0
        %v622 = vmax.f32 %v570, 0.0
        %v623 = vmax.f32 %v575, 0.0
        %v624 = vmax.f32 %v578, 0.0
        %v625 = vmax.f32 %v583, 0.0
        %v626 = vmax.f32 %v586, 0.0
        %v627 = vmax.f32 %v591, 0.0
        %v628 = vmax.f32 %v594, 0.0
        %v629 = vmax.f32 %v599, 0.0
        %v630 = vmax.f32 %v602, 0.0
        %v631 = vmax.f32 %v607, 0.0
        %v632 = vmax.f32 %v610, 0.0
        %633 = vst [vmem:[#allocation2] sm:$0xff] %v617
        %634 = vst [vmem:[#allocation2 + $0x8] sm:$0xff] %v618
        %635 = vst [vmem:[#allocation2 + $0x10] sm:$0xff] %v619
        %636 = vst [vmem:[#allocation2 + $0x18] sm:$0xff] %v620
        %637 = vst [vmem:[#allocation2 + $0x20] sm:$0xff] %v621
        %638 = vst [vmem:[#allocation2 + $0x28] sm:$0xff] %v622
        %639 = vst [vmem:[#allocation2 + $0x30] sm:$0xff] %v623
        %640 = vst [vmem:[#allocation2 + $0x38] sm:$0xff] %v624
        %641 = vst [vmem:[#allocation2 + $0x40] sm:$0xff] %v625
        %642 = vst [vmem:[#allocation2 + $0x48] sm:$0xff] %v626
        %643 = vst [vmem:[#allocation2 + $0x50] sm:$0xff] %v627
        %644 = vst [vmem:[#allocation2 + $0x58] sm:$0xff] %v628
        %645 = vst [vmem:[#allocation2 + $0x60] sm:$0xff] %v629
        %646 = vst [vmem:[#allocation2 + $0x68] sm:$0xff] %v630
        %647 = vst [vmem:[#allocation2 + $0x70] sm:$0xff] %v631
        %648 = vst [vmem:[#allocation2 + $0x78] sm:$0xff] %v632
      $region74: #{gcn_c_forward.1} parent=31 // pred_fallthru
        _
      %p649 = scmp.eq.s32.totalorder %s15, 2
      // Predicated region
      $region75: #{gcn_c_forward.1} parent=31 // pred_check
        %p650 = pneg %p649
      $region76: #{gcn_c_forward.1} parent=31 // pred_check_branch
        %652 = sbr.rel (%p650) target = $region78
      $region77: #{gcn_c_forward.1} parent=31 // pred_region
        %653 = vst [vmem:[%s4] sm:$0xff] %v551
        %654 = vst [vmem:[%s4 + $0x8] sm:$0xff] %v554
        %655 = vst [vmem:[%s4 + $0x10] sm:$0xff] %v559
        %656 = vst [vmem:[%s4 + $0x18] sm:$0xff] %v562
        %657 = vst [vmem:[%s4 + $0x20] sm:$0xff] %v567
        %658 = vst [vmem:[%s4 + $0x28] sm:$0xff] %v570
        %659 = vst [vmem:[%s4 + $0x30] sm:$0xff] %v575
        %660 = vst [vmem:[%s4 + $0x38] sm:$0xff] %v578
        %661 = vst [vmem:[%s4 + $0x40] sm:$0xff] %v583
        %662 = vst [vmem:[%s4 + $0x48] sm:$0xff] %v586
        %663 = vst [vmem:[%s4 + $0x50] sm:$0xff] %v591
        %664 = vst [vmem:[%s4 + $0x58] sm:$0xff] %v594
        %665 = vst [vmem:[%s4 + $0x60] sm:$0xff] %v599
        %666 = vst [vmem:[%s4 + $0x68] sm:$0xff] %v602
        %667 = vst [vmem:[%s4 + $0x70] sm:$0xff] %v607
        %668 = vst [vmem:[%s4 + $0x78] sm:$0xff] %v610
      $region78: #{gcn_c_forward.1} parent=31 // pred_fallthru
        _
      // Predicated region
      $region79: #{gcn_c_forward.1} parent=31 // pred_check
        %p669 = pneg %p101
      $region80: #{gcn_c_forward.1} parent=31 // pred_check_branch
        %671 = sbr.rel (%p669) target = $region82
      $region81: #{gcn_c_forward.1} parent=31 // pred_region
        _
      $region82: #{gcn_c_forward.1} parent=31 // pred_fallthru
        _
      // Predicated region
      $region83: #{gcn_c_forward.1} parent=31 // pred_check
        %p672 = pneg %p101
      $region84: #{gcn_c_forward.1} parent=31 // pred_check_branch
        %674 = sbr.rel (%p672) target = $region86
      $region85: #{gcn_c_forward.1} parent=31 // pred_region
        _
      $region86: #{gcn_c_forward.1} parent=31 // pred_fallthru
        _
    $region32: #{gcn_c_forward.1} parent=5 // pred_fallthru
      _
    %p675 = scmp.le.s32.totalorder 2, %s10
    // Predicated region
    $region87: #{gcn_c_forward.1} parent=5 // pred_check
      %p676 = pneg %p675
    $region88: #{gcn_c_forward.1} parent=5 // pred_check_branch
      %678 = sbr.rel (%p676) target = $region90
    $region89: #{gcn_c_forward.1} parent=5 // pred_region
      %s679 = ssub.s32 %s10, 2
    $region90: #{gcn_c_forward.1} parent=5 // pred_fallthru
      _
  $region6: #{gcn_c_forward.1} parent=0 // loop_footer
    %s14 = sadd.s32 1, %s10
  $region7: #{gcn_c_forward.1} parent=0 // loop_footer_branch
    %9 = sbr.rel target = $region3
  $region8: #{gcn_c_forward.1} parent=0 // loop_exit
    _
  %680 = vsyncmov [#allocation3]
  %s681 = vpop.sfrf %680
  %p682 = scmp.eq.s32.totalorder %s681, 0
  %p683 = pneg %p682
  %685 = shalt.err (%p683)

// kernel: gcn_c_forward.1
$region0: #{gcn_c_forward.1}
  #allocation0 [shape = 'u32[]', space=smem, size = 0x4, offset = 0x4, fixed_abs, tag = 'smem constant byte address 0x4 - core index']
  #allocation1 [shape = 'u32[144,128]{1,0:T(1,128)}', space=vmem, size = 0x12000, scoped, tag = 'internal scratch']
  #allocation2 [shape = 'f32[128,128]{1,0:T(8,128)}', space=vmem, size = 0x10000, scoped, tag = 'scratch operand']
  #allocation3 [shape = 's32[1]{0}', space=sflag, size = 0x4, scoped, tag = 'scratch operand']
  #allocation4 [shape = 's32[]', space=sflag, size = 0x4, offset = 0, fixed_abs, tag = 'sflag constant byte address 0x0 - dummy sync flag']
  %s0 = inlined_call_operand.vmem [shape: bf16[128,128], index: 0, kind: input, shape index: {}]
  %s1 = inlined_call_operand.vmem [shape: f32[128,128], index: 1, kind: input, shape index: {}]
  %s2 = inlined_call_operand.vmem [shape: bf16[3,128,128], index: 2, kind: input, shape index: {}]
  %s3 = inlined_call_operand.vmem [shape: f32[3,1,128], index: 3, kind: input, shape index: {}]
  %s4 = inlined_call_operand.vmem [shape: f32[128,128], index: 4, kind: output, shape index: {}]
  %s5 = sld [smem:[#allocation0]]
  $region91: #{gcn_c_forward.1} parent=0
    _
  %s7 = ssub.s32 1, %s5
  %s8 = scalar_select 0, %s7, %s5
  loop: start=0, step=1, limit=5
  $region2: #{gcn_c_forward.1} parent=0 // loop_pre_header
    _
  $region3: #{gcn_c_forward.1} parent=0 // loop_header
    %s10 = sphi 0, %s14
    %p11 = scmp.ge.s32.totalorder %s10, 5
    %s18 = sphi 0, %s18
    %s20 = sphi 0, %s18
    %s21 = sphi 0, %s20
    %s35 = sphi 0, %s21
    %s41 = sphi 0, %s43
    %s44 = sphi 0, %s41
    %s45 = sphi 0, %s44
    %s61 = sphi 0, %s45
    %s67 = sphi 0, %s69
    %s70 = sphi 0, %s67
    %s71 = sphi 0, %s70
    %s87 = sphi 0, %s71
    %s91 = sphi 0, %s91
    %s93 = sphi 0, %s91
    %s94 = sphi 0, %s93
    %s108 = sphi 0, %s94
  $region4: #{gcn_c_forward.1} parent=0 // loop_header_branch
    %13 = sbr.rel (%p11) target = $region8
  $region5: #{gcn_c_forward.1} parent=0 // loop_body
    %s15 = ssub.s32 %s10, 1
    %s16 = ssub.s32 %s10, 2
    %s17 = sadd.s32 %s10, 1
    %s19 = sadd.s32 %s18, 1
    %p22 = scmp.eq.s32.totalorder %s10, 2
    %p23 = scmp.ne.s32.totalorder %s18, %s20
    %p24 = scmp.eq.s32.totalorder %s10, 0
    %p25 = por %p23, %p24
    %p26 = scmp.ne.s32.totalorder %s18, %s20
    %p27 = scmp.eq.s32.totalorder %s15, 2
    %p28 = por %p26, %p27
    %p29 = scmp.ne.s32.totalorder %s20, %s21
    %p30 = scmp.eq.s32.totalorder %s15, 0
    %p31 = por %p29, %p30
    %p32 = scmp.ne.s32.totalorder %s20, %s21
    %p33 = scmp.eq.s32.totalorder %s16, 2
    %p34 = por %p32, %p33
    %p36 = scmp.ne.s32.totalorder %s21, %s35
    %p37 = scmp.eq.s32.totalorder %s16, 0
    %p38 = por %p36, %p37
    %s39 = ssub.s32 %s10, %s17
    %p40 = scmp.eq.s32.totalorder %s39, 0
    %s42 = sadd.s32 %s41, 1
    %s43 = scalar_select %p40, %s41, %s42
    %p46 = pneg %p40
    %p47 = scmp.eq.s32.totalorder %s10, 2
    %p48 = por %p46, %p47
    %p49 = scmp.ne.s32.totalorder %s41, %s44
    %p50 = scmp.eq.s32.totalorder %s10, 0
    %p51 = por %p49, %p50
    %p52 = scmp.ne.s32.totalorder %s41, %s44
    %p53 = scmp.eq.s32.totalorder %s15, 2
    %p54 = por %p52, %p53
    %p55 = scmp.ne.s32.totalorder %s44, %s45
    %p56 = scmp.eq.s32.totalorder %s15, 0
    %p57 = por %p55, %p56
    %p58 = scmp.ne.s32.totalorder %s44, %s45
    %p59 = scmp.eq.s32.totalorder %s16, 2
    %p60 = por %p58, %p59
    %p62 = scmp.ne.s32.totalorder %s45, %s61
    %p63 = scmp.eq.s32.totalorder %s16, 0
    %p64 = por %p62, %p63
    %s65 = ssub.s32 %s10, %s17
    %p66 = scmp.eq.s32.totalorder %s65, 0
    %s68 = sadd.s32 %s67, 1
    %s69 = scalar_select %p66, %s67, %s68
    %p72 = pneg %p66
    %p73 = scmp.eq.s32.totalorder %s10, 2
    %p74 = por %p72, %p73
    %p75 = scmp.ne.s32.totalorder %s67, %s70
    %p76 = scmp.eq.s32.totalorder %s10, 0
    %p77 = por %p75, %p76
    %p78 = scmp.ne.s32.totalorder %s67, %s70
    %p79 = scmp.eq.s32.totalorder %s15, 2
    %p80 = por %p78, %p79
    %p81 = scmp.ne.s32.totalorder %s70, %s71
    %p82 = scmp.eq.s32.totalorder %s15, 0
    %p83 = por %p81, %p82
    %p84 = scmp.ne.s32.totalorder %s70, %s71
    %p85 = scmp.eq.s32.totalorder %s16, 2
    %p86 = por %p84, %p85
    %p88 = scmp.ne.s32.totalorder %s71, %s87
    %p89 = scmp.eq.s32.totalorder %s16, 0
    %p90 = por %p88, %p89
    %s92 = sadd.s32 %s91, 1
    %p95 = scmp.eq.s32.totalorder %s10, 2
    %p96 = scmp.ne.s32.totalorder %s91, %s93
    %p97 = scmp.eq.s32.totalorder %s10, 0
    %p98 = por %p96, %p97
    %p99 = scmp.ne.s32.totalorder %s91, %s93
    %p100 = scmp.eq.s32.totalorder %s15, 2
    %p101 = por %p99, %p100
    %p102 = scmp.ne.s32.totalorder %s93, %s94
    %p103 = scmp.eq.s32.totalorder %s15, 0
    %p104 = por %p102, %p103
    %p105 = scmp.ne.s32.totalorder %s93, %s94
    %p106 = scmp.eq.s32.totalorder %s16, 2
    %p107 = por %p105, %p106
    %p109 = scmp.ne.s32.totalorder %s94, %s108
    %p110 = scmp.eq.s32.totalorder %s16, 0
    %p111 = por %p109, %p110
    %p112 = scmp.le.s32.totalorder 1, %s10
    %p113 = scmp.lt.s32.totalorder %s10, 4
    %p114 = pnand %p112, %p113
    %p115 = pneg %p114
    // Predicated region
    $region9: #{gcn_c_forward.1} parent=5 // pred_check
      _
    $region10: #{gcn_c_forward.1} parent=5 // pred_check_branch
      %117 = sbr.rel (%p114) target = $region12
    $region11: #{gcn_c_forward.1} parent=5 // pred_region
      %s118 = ssub.s32 %s10, 1
      // Predicated region
      $region13: #{gcn_c_forward.1} parent=11 // pred_check
        %p119 = pneg %p31
      $region14: #{gcn_c_forward.1} parent=11 // pred_check_branch
        %121 = sbr.rel (%p119) target = $region16
      $region15: #{gcn_c_forward.1} parent=11 // pred_region
        _
      $region16: #{gcn_c_forward.1} parent=11 // pred_fallthru
        _
    $region12: #{gcn_c_forward.1} parent=5 // pred_fallthru
      _
    %p122 = scmp.lt.s32.totalorder %s10, 3
    // Predicated region
    $region17: #{gcn_c_forward.1} parent=5 // pred_check
      %p123 = pneg %p122
    $region18: #{gcn_c_forward.1} parent=5 // pred_check_branch
      %125 = sbr.rel (%p123) target = $region20
    $region19: #{gcn_c_forward.1} parent=5 // pred_region
      // Predicated region
      $region21: #{gcn_c_forward.1} parent=19 // pred_check
        %p126 = pneg %p51
      $region22: #{gcn_c_forward.1} parent=19 // pred_check_branch
        %128 = sbr.rel (%p126) target = $region24
      $region23: #{gcn_c_forward.1} parent=19 // pred_region
        %p129 = scmp.lt.s32.totalorder %s10, 2
        %s130 = scalar_select %p129, %s10, 2
        %s131 = smul.addr %s130, 16
        %s132 = smul.addr %s131, 4
        %s133 = scalar_lea.vmem %s2, %s132
      $region24: #{gcn_c_forward.1} parent=19 // pred_fallthru
        _
      // Predicated region
      $region25: #{gcn_c_forward.1} parent=19 // pred_check
        %p134 = pneg %p77
      $region26: #{gcn_c_forward.1} parent=19 // pred_check_branch
        %136 = sbr.rel (%p134) target = $region28
      $region27: #{gcn_c_forward.1} parent=19 // pred_region
        %p137 = scmp.lt.s32.totalorder %s10, 2
        %s138 = scalar_select %p137, %s10, 2
        %s139 = scalar_lea.vmem %s3, %s138
      $region28: #{gcn_c_forward.1} parent=19 // pred_fallthru
        _
    $region20: #{gcn_c_forward.1} parent=5 // pred_fallthru
      _
    %p140 = scmp.le.s32.totalorder 1, %s10
    %p141 = scmp.lt.s32.totalorder %s10, 4
    %p142 = pnand %p140, %p141
    %p143 = pneg %p142
    // Predicated region
    $region29: #{gcn_c_forward.1} parent=5 // pred_check
      _
    $region30: #{gcn_c_forward.1} parent=5 // pred_check_branch
      %145 = sbr.rel (%p142) target = $region32
    $region31: #{gcn_c_forward.1} parent=5 // pred_region
      %s146 = ssub.s32 %s10, 1
      %p147 = pneg %p31
      %p148 = pneg %p28
      %p149 = scmp.lt.s32.totalorder %s15, 2
      %s150 = scalar_select %p149, %s15, 2
      %s151 = smul.addr %s150, 16
      %s152 = smul.addr %s151, 4
      %s153 = scalar_lea.vmem %s2, %s152
      %p154 = pneg %p57
      %p155 = pneg %p54
      %p156 = scmp.lt.s32.totalorder %s15, 2
      %s157 = scalar_select %p156, %s15, 2
      %s158 = scalar_lea.vmem %s3, %s157
      %p159 = pneg %p83
      %p160 = pneg %p80
      %p161 = pneg %p104
      %p162 = pneg %p101
      %p163 = scmp.lt.s32.totalorder %s15, 2
      %s164 = scalar_select %p163, %s15, 2
      %s165 = smul.addr %s164, 16
      %s166 = smul.addr %s165, 4
      %s167 = scalar_lea.vmem %s2, %s166
      %p168 = scmp.lt.s32.totalorder %s15, 2
      %s169 = scalar_select %p168, %s15, 2
      %s170 = scalar_lea.vmem %s3, %s169
      %p172 = scmp.eq.s32.totalorder %s15, 0
      // Predicated region
      $region33: #{gcn_c_forward.1} parent=31 // pred_check
        %p173 = pneg %p172
      $region34: #{gcn_c_forward.1} parent=31 // pred_check_branch
        %175 = sbr.rel (%p173) target = $region36
      $region35: #{gcn_c_forward.1} parent=31 // pred_region
        %p177 = scmp.lt.u32.totalorder 128, 8
        %p178 = pneg %p177
        // Predicated region
        $region37: #{gcn_c_forward.1} parent=35 // pred_check
          _
        $region38: #{gcn_c_forward.1} parent=35 // pred_check_branch
          %180 = sbr.rel (%p177) target = $region40
        $region39: #{gcn_c_forward.1} parent=35 // pred_region
          %s196 = sand.u32 128, 7
          %p197 = scmp.eq.s32.totalorder %s196, 0
          // Predicated region
          $region52: #{gcn_c_forward.1} parent=39 // pred_check
            %p198 = pneg %p197
          $region53: #{gcn_c_forward.1} parent=39 // pred_check_branch
            %200 = sbr.rel (%p198) target = $region55
          $region54: #{gcn_c_forward.1} parent=39 // pred_region
            loop: start=0, step=1, limit=1
            $region56: #{gcn_c_forward.1} parent=54 // loop_pre_header
              _
            $region57: #{gcn_c_forward.1} parent=54 // loop_header
              %s202 = sphi 0, %s206
              %p203 = scmp.ge.s32.totalorder %s202, 1
              %s207 = sphi %s1, %s1
              %s208 = sphi [#allocation2], [#allocation2]
            $region58: #{gcn_c_forward.1} parent=54 // loop_header_branch
              %205 = sbr.rel (%p203) target = $region62
            $region59: #{gcn_c_forward.1} parent=54 // loop_body
              %v209 = vld [vmem:[%s207] sm:$0xff]
              %210 = vst [vmem:[%s208] sm:$0xff] %v209
              %v211 = vld [vmem:[%s207 + $0x8] sm:$0xff]
              %212 = vst [vmem:[%s208 + $0x8] sm:$0xff] %v211
              %v213 = vld [vmem:[%s207 + $0x10] sm:$0xff]
              %214 = vst [vmem:[%s208 + $0x10] sm:$0xff] %v213
              %v215 = vld [vmem:[%s207 + $0x18] sm:$0xff]
              %216 = vst [vmem:[%s208 + $0x18] sm:$0xff] %v215
              %v217 = vld [vmem:[%s207 + $0x20] sm:$0xff]
              %218 = vst [vmem:[%s208 + $0x20] sm:$0xff] %v217
              %v219 = vld [vmem:[%s207 + $0x28] sm:$0xff]
              %220 = vst [vmem:[%s208 + $0x28] sm:$0xff] %v219
              %v221 = vld [vmem:[%s207 + $0x30] sm:$0xff]
              %222 = vst [vmem:[%s208 + $0x30] sm:$0xff] %v221
              %v223 = vld [vmem:[%s207 + $0x38] sm:$0xff]
              %224 = vst [vmem:[%s208 + $0x38] sm:$0xff] %v223
              %v225 = vld [vmem:[%s207 + $0x40] sm:$0xff]
              %226 = vst [vmem:[%s208 + $0x40] sm:$0xff] %v225
              %v227 = vld [vmem:[%s207 + $0x48] sm:$0xff]
              %228 = vst [vmem:[%s208 + $0x48] sm:$0xff] %v227
              %v229 = vld [vmem:[%s207 + $0x50] sm:$0xff]
              %230 = vst [vmem:[%s208 + $0x50] sm:$0xff] %v229
              %v231 = vld [vmem:[%s207 + $0x58] sm:$0xff]
              %232 = vst [vmem:[%s208 + $0x58] sm:$0xff] %v231
              %v233 = vld [vmem:[%s207 + $0x60] sm:$0xff]
              %234 = vst [vmem:[%s208 + $0x60] sm:$0xff] %v233
              %v235 = vld [vmem:[%s207 + $0x68] sm:$0xff]
              %236 = vst [vmem:[%s208 + $0x68] sm:$0xff] %v235
              %v237 = vld [vmem:[%s207 + $0x70] sm:$0xff]
              %238 = vst [vmem:[%s208 + $0x70] sm:$0xff] %v237
              %v239 = vld [vmem:[%s207 + $0x78] sm:$0xff]
              %240 = vst [vmem:[%s208 + $0x78] sm:$0xff] %v239
            $region60: #{gcn_c_forward.1} parent=54 // loop_footer
              %s206 = sadd.s32 1, %s202
            $region61: #{gcn_c_forward.1} parent=54 // loop_footer_branch
              %201 = sbr.rel target = $region57
            $region62: #{gcn_c_forward.1} parent=54 // loop_exit
              _
          $region55: #{gcn_c_forward.1} parent=39 // pred_fallthru
            _
          %p241 = pneg %p197
          // Predicated region
          $region63: #{gcn_c_forward.1} parent=39 // pred_check
            _
          $region64: #{gcn_c_forward.1} parent=39 // pred_check_branch
            %243 = sbr.rel (%p197) target = $region66
          $region65: #{gcn_c_forward.1} parent=39 // pred_region
            %s244 = sand.u32 128, 7
          $region66: #{gcn_c_forward.1} parent=39 // pred_fallthru
            _
        $region40: #{gcn_c_forward.1} parent=35 // pred_fallthru
          _
        // Predicated region
        $region41: #{gcn_c_forward.1} parent=35 // pred_check
          %p181 = pneg %p177
        $region42: #{gcn_c_forward.1} parent=35 // pred_check_branch
          %183 = sbr.rel (%p181) target = $region44
        $region43: #{gcn_c_forward.1} parent=35 // pred_region
          %s184 = sshll.u32 1, 128
          %s185 = ssub.s32 %s184, 1
          loop: start=0, step=1, limit=1
          $region45: #{gcn_c_forward.1} parent=43 // loop_pre_header
            _
          $region46: #{gcn_c_forward.1} parent=43 // loop_header
            %s187 = sphi 0, %s191
            %p188 = scmp.ge.s32.totalorder %s187, 1
            %s192 = sphi %s1, %s1
            %s193 = sphi [#allocation2], [#allocation2]
          $region47: #{gcn_c_forward.1} parent=43 // loop_header_branch
            %190 = sbr.rel (%p188) target = $region51
          $region48: #{gcn_c_forward.1} parent=43 // loop_body
            %v194 = vld [vmem:[%s192] sm:%s185]
            %195 = vst [vmem:[%s193] sm:%s185] %v194
          $region49: #{gcn_c_forward.1} parent=43 // loop_footer
            %s191 = sadd.s32 1, %s187
          $region50: #{gcn_c_forward.1} parent=43 // loop_footer_branch
            %186 = sbr.rel target = $region46
          $region51: #{gcn_c_forward.1} parent=43 // loop_exit
            _
        $region44: #{gcn_c_forward.1} parent=35 // pred_fallthru
          _
        // Predicated region
        $region67: #{gcn_c_forward.1} parent=35 // pred_check
          _
        $region68: #{gcn_c_forward.1} parent=35 // pred_check_branch
          %247 = sbr.rel (0) target = $region70
        $region69: #{gcn_c_forward.1} parent=35 // pred_region
          %248 = vsyncadd [#allocation3], 2048
        $region70: #{gcn_c_forward.1} parent=35 // pred_fallthru
          _
        %s249 = smul.u32 128, 1
        %s250 = sshll.u32 %s249, 4
        %251 = dma.done [#allocation3], %s250
      $region36: #{gcn_c_forward.1} parent=31 // pred_fallthru
        _
      %v252 = vld [vmem:[#allocation2] sm:$0xff]
      %v253 = vld [vmem:[#allocation2 + $0x8] sm:$0xff]
      %v254 = vld [vmem:[#allocation2 + $0x10] sm:$0xff]
      %v255 = vld [vmem:[#allocation2 + $0x18] sm:$0xff]
      %v256 = vld [vmem:[#allocation2 + $0x20] sm:$0xff]
      %v257 = vld [vmem:[#allocation2 + $0x28] sm:$0xff]
      %v258 = vld [vmem:[#allocation2 + $0x30] sm:$0xff]
      %v259 = vld [vmem:[#allocation2 + $0x38] sm:$0xff]
      %v260 = vld [vmem:[#allocation2 + $0x40] sm:$0xff]
      %v261 = vld [vmem:[#allocation2 + $0x48] sm:$0xff]
      %v262 = vld [vmem:[#allocation2 + $0x50] sm:$0xff]
      %v263 = vld [vmem:[#allocation2 + $0x58] sm:$0xff]
      %v264 = vld [vmem:[#allocation2 + $0x60] sm:$0xff]
      %v265 = vld [vmem:[#allocation2 + $0x68] sm:$0xff]
      %v266 = vld [vmem:[#allocation2 + $0x70] sm:$0xff]
      %v267 = vld [vmem:[#allocation2 + $0x78] sm:$0xff]
      %v268 = vpack.c.bf16 %v253, %v252
      %v269 = vpack.c.bf16 %v255, %v254
      %v270 = vpack.c.bf16 %v257, %v256
      %v271 = vpack.c.bf16 %v259, %v258
      %v272 = vpack.c.bf16 %v261, %v260
      %v273 = vpack.c.bf16 %v263, %v262
      %v274 = vpack.c.bf16 %v265, %v264
      %v275 = vpack.c.bf16 %v267, %v266
      %v276 = vld [vmem:[%s167] sm:$0xf]
      %v277 = vld [vmem:[%s167 + $0x4] sm:$0xf]
      %v278 = vld [vmem:[%s167 + $0x8] sm:$0xf]
      %v279 = vld [vmem:[%s167 + $0xc] sm:$0xf]
      %v280 = vld [vmem:[%s167 + $0x10] sm:$0xf]
      %v281 = vld [vmem:[%s167 + $0x14] sm:$0xf]
      %v282 = vld [vmem:[%s167 + $0x18] sm:$0xf]
      %v283 = vld [vmem:[%s167 + $0x1c] sm:$0xf]
      %v284 = vld [vmem:[%s167 + $0x20] sm:$0xf]
      %v285 = vld [vmem:[%s167 + $0x24] sm:$0xf]
      %v286 = vld [vmem:[%s167 + $0x28] sm:$0xf]
      %v287 = vld [vmem:[%s167 + $0x2c] sm:$0xf]
      %v288 = vld [vmem:[%s167 + $0x30] sm:$0xf]
      %v289 = vld [vmem:[%s167 + $0x34] sm:$0xf]
      %v290 = vld [vmem:[%s167 + $0x38] sm:$0xf]
      %v291 = vld [vmem:[%s167 + $0x3c] sm:$0xf]
      %v292 = vld [vmem:[%s170] sm:$0x1]
      %v294 = vlaneseq
      %v295 = vshrl.u32 %v294, 7
      %v296 = vsub.s32 0, %v295
      %v297 = vrot.slane %v292, %v296
      %v315 = vunpack.c.l.b16 %v276
      %v316 = vunpack.c.l.b16 %v277
      %v317 = vunpack.c.l.b16 %v278
      %v318 = vunpack.c.l.b16 %v279
      %v319 = vunpack.c.l.b16 %v280
      %v320 = vunpack.c.l.b16 %v281
      %v321 = vunpack.c.l.b16 %v282
      %v322 = vunpack.c.l.b16 %v283
      %v323 = vunpack.c.l.b16 %v284
      %v324 = vunpack.c.l.b16 %v285
      %v325 = vunpack.c.l.b16 %v286
      %v326 = vunpack.c.l.b16 %v287
      %v327 = vunpack.c.l.b16 %v288
      %v328 = vunpack.c.l.b16 %v289
      %v329 = vunpack.c.l.b16 %v290
      %v330 = vunpack.c.l.b16 %v291
      %v331 = vpack.c.b16 %v316, %v315
      %v332 = vpack.c.b16 %v318, %v317
      %v333 = vpack.c.b16 %v320, %v319
      %v334 = vpack.c.b16 %v322, %v321
      %v335 = vpack.c.b16 %v324, %v323
      %v336 = vpack.c.b16 %v326, %v325
      %v337 = vpack.c.b16 %v328, %v327
      %v338 = vpack.c.b16 %v330, %v329
      %347 = vmatprep.subr.bf16.mxu0 0
      %348 = vmatpush1.bf16.msra.mxu0 %v338
      %349 = vmatprep.subr.bf16.mxu0 0
      %350 = vmatpush1.bf16.msra.mxu0 %v337
      %351 = vmatprep.subr.bf16.mxu0 0
      %352 = vmatpush1.bf16.msra.mxu0 %v336
      %353 = vmatprep.subr.bf16.mxu0 0
      %354 = vmatpush1.bf16.msra.mxu0 %v335
      %355 = vmatprep.subr.bf16.mxu0 0
      %356 = vmatpush1.bf16.msra.mxu0 %v334
      %357 = vmatprep.subr.bf16.mxu0 0
      %358 = vmatpush1.bf16.msra.mxu0 %v333
      %359 = vmatprep.subr.bf16.mxu0 0
      %360 = vmatpush1.bf16.msra.mxu0 %v332
      %361 = vmatprep.subr.bf16.mxu0 0
      %362 = vmatpush1.bf16.msra.mxu0 %v331
      %363 = vmatprep.subr.bf16.mxu0 0
      %364 = vmatpush2.bf16.msra.mxu0 0
      %365 = vmatprep.subr.bf16.mxu0 0
      %366 = vmatpush2.bf16.msra.mxu0 0
      %367 = vmatprep.subr.bf16.mxu0 0
      %368 = vmatpush2.bf16.msra.mxu0 0
      %369 = vmatprep.subr.bf16.mxu0 0
      %370 = vmatpush2.bf16.msra.mxu0 0
      %371 = vmatprep.subr.bf16.mxu0 0
      %372 = vmatpush2.bf16.msra.mxu0 0
      %373 = vmatprep.subr.bf16.mxu0 0
      %374 = vmatpush2.bf16.msra.mxu0 0
      %375 = vmatprep.subr.bf16.mxu0 0
      %376 = vmatpush2.bf16.msra.mxu0 0
      %377 = vmatprep.subr.bf16.mxu0 0
      %378 = vmatpush2.bf16.msra.mxu0 0
      %379 = vmatprep.mubr.bf16.mxu0 0
      %380 = vmatmul.mubr.bf16.gmra.mxu0 %v268
      %v381 = vpop.f32.mrf.mxu0
      %v382 = vadd.f32 %v297, %v381
      %v383 = vpop.f32.mrf.mxu0
      %v384 = vpop.f32.mrf.mxu0
      %v385 = vadd.f32 %v297, %v384
      %v386 = vpop.f32.mrf.mxu0
      %387 = vmatprep.mubr.bf16.mxu0 0
      %388 = vmatmul.mubr.bf16.gmra.mxu0 %v269
      %v389 = vpop.f32.mrf.mxu0
      %v390 = vadd.f32 %v297, %v389
      %v391 = vpop.f32.mrf.mxu0
      %v392 = vpop.f32.mrf.mxu0
      %v393 = vadd.f32 %v297, %v392
      %v394 = vpop.f32.mrf.mxu0
      %395 = vmatprep.mubr.bf16.mxu0 0
      %396 = vmatmul.mubr.bf16.gmra.mxu0 %v270
      %v397 = vpop.f32.mrf.mxu0
      %v398 = vadd.f32 %v297, %v397
      %v399 = vpop.f32.mrf.mxu0
      %v400 = vpop.f32.mrf.mxu0
      %v401 = vadd.f32 %v297, %v400
      %v402 = vpop.f32.mrf.mxu0
      %403 = vmatprep.mubr.bf16.mxu0 0
      %404 = vmatmul.mubr.bf16.gmra.mxu0 %v271
      %v405 = vpop.f32.mrf.mxu0
      %v406 = vadd.f32 %v297, %v405
      %v407 = vpop.f32.mrf.mxu0
      %v408 = vpop.f32.mrf.mxu0
      %v409 = vadd.f32 %v297, %v408
      %v410 = vpop.f32.mrf.mxu0
      %411 = vmatprep.mubr.bf16.mxu0 0
      %412 = vmatmul.mubr.bf16.gmra.mxu0 %v272
      %v413 = vpop.f32.mrf.mxu0
      %v414 = vadd.f32 %v297, %v413
      %v415 = vpop.f32.mrf.mxu0
      %v416 = vpop.f32.mrf.mxu0
      %v417 = vadd.f32 %v297, %v416
      %v418 = vpop.f32.mrf.mxu0
      %419 = vmatprep.mubr.bf16.mxu0 0
      %420 = vmatmul.mubr.bf16.gmra.mxu0 %v273
      %v421 = vpop.f32.mrf.mxu0
      %v422 = vadd.f32 %v297, %v421
      %v423 = vpop.f32.mrf.mxu0
      %v424 = vpop.f32.mrf.mxu0
      %v425 = vadd.f32 %v297, %v424
      %v426 = vpop.f32.mrf.mxu0
      %427 = vmatprep.mubr.bf16.mxu0 0
      %428 = vmatmul.mubr.bf16.gmra.mxu0 %v274
      %v429 = vpop.f32.mrf.mxu0
      %v430 = vadd.f32 %v297, %v429
      %v431 = vpop.f32.mrf.mxu0
      %v432 = vpop.f32.mrf.mxu0
      %v433 = vadd.f32 %v297, %v432
      %v434 = vpop.f32.mrf.mxu0
      %435 = vmatprep.mubr.bf16.mxu0 0
      %436 = vmatmul.mubr.bf16.gmra.mxu0 %v275
      %v437 = vpop.f32.mrf.mxu0
      %v438 = vadd.f32 %v297, %v437
      %v439 = vpop.f32.mrf.mxu0
      %v440 = vpop.f32.mrf.mxu0
      %v441 = vadd.f32 %v297, %v440
      %v442 = vpop.f32.mrf.mxu0
      %443 = vdwg.mxu0
      %v444 = vld [vmem:[%s0] sm:$0xf]
      %v445 = vld [vmem:[%s0 + $0x4] sm:$0xf]
      %v446 = vld [vmem:[%s0 + $0x8] sm:$0xf]
      %v447 = vld [vmem:[%s0 + $0xc] sm:$0xf]
      %v448 = vld [vmem:[%s0 + $0x10] sm:$0xf]
      %v449 = vld [vmem:[%s0 + $0x14] sm:$0xf]
      %v450 = vld [vmem:[%s0 + $0x18] sm:$0xf]
      %v451 = vld [vmem:[%s0 + $0x1c] sm:$0xf]
      %v452 = vld [vmem:[%s0 + $0x20] sm:$0xf]
      %v453 = vld [vmem:[%s0 + $0x24] sm:$0xf]
      %v454 = vld [vmem:[%s0 + $0x28] sm:$0xf]
      %v455 = vld [vmem:[%s0 + $0x2c] sm:$0xf]
      %v456 = vld [vmem:[%s0 + $0x30] sm:$0xf]
      %v457 = vld [vmem:[%s0 + $0x34] sm:$0xf]
      %v458 = vld [vmem:[%s0 + $0x38] sm:$0xf]
      %v459 = vld [vmem:[%s0 + $0x3c] sm:$0xf]
      %v460 = vpack.c.bf16 %v385, %v382
      %v461 = vpack.c.bf16 %v393, %v390
      %v462 = vpack.c.bf16 %v401, %v398
      %v463 = vpack.c.bf16 %v409, %v406
      %v464 = vpack.c.bf16 %v417, %v414
      %v465 = vpack.c.bf16 %v425, %v422
      %v466 = vpack.c.bf16 %v433, %v430
      %v467 = vpack.c.bf16 %v441, %v438
      %v484 = vunpack.c.l.b16 %v444
      %v485 = vunpack.c.l.b16 %v445
      %v486 = vunpack.c.l.b16 %v446
      %v487 = vunpack.c.l.b16 %v447
      %v488 = vunpack.c.l.b16 %v448
      %v489 = vunpack.c.l.b16 %v449
      %v490 = vunpack.c.l.b16 %v450
      %v491 = vunpack.c.l.b16 %v451
      %v492 = vunpack.c.l.b16 %v452
      %v493 = vunpack.c.l.b16 %v453
      %v494 = vunpack.c.l.b16 %v454
      %v495 = vunpack.c.l.b16 %v455
      %v496 = vunpack.c.l.b16 %v456
      %v497 = vunpack.c.l.b16 %v457
      %v498 = vunpack.c.l.b16 %v458
      %v499 = vunpack.c.l.b16 %v459
      %v500 = vpack.c.b16 %v485, %v484
      %v501 = vpack.c.b16 %v487, %v486
      %v502 = vpack.c.b16 %v489, %v488
      %v503 = vpack.c.b16 %v491, %v490
      %v504 = vpack.c.b16 %v493, %v492
      %v505 = vpack.c.b16 %v495, %v494
      %v506 = vpack.c.b16 %v497, %v496
      %v507 = vpack.c.b16 %v499, %v498
      %516 = vmatprep.subr.bf16.mxu0 0
      %517 = vmatpush1.bf16.msra.mxu0 %v467
      %518 = vmatprep.subr.bf16.mxu0 0
      %519 = vmatpush1.bf16.msra.mxu0 %v466
      %520 = vmatprep.subr.bf16.mxu0 0
      %521 = vmatpush1.bf16.msra.mxu0 %v465
      %522 = vmatprep.subr.bf16.mxu0 0
      %523 = vmatpush1.bf16.msra.mxu0 %v464
      %524 = vmatprep.subr.bf16.mxu0 0
      %525 = vmatpush1.bf16.msra.mxu0 %v463
      %526 = vmatprep.subr.bf16.mxu0 0
      %527 = vmatpush1.bf16.msra.mxu0 %v462
      %528 = vmatprep.subr.bf16.mxu0 0
      %529 = vmatpush1.bf16.msra.mxu0 %v461
      %530 = vmatprep.subr.bf16.mxu0 0
      %531 = vmatpush1.bf16.msra.mxu0 %v460
      %532 = vmatprep.subr.bf16.mxu0 0
      %533 = vmatpush2.bf16.msra.mxu0 0
      %534 = vmatprep.subr.bf16.mxu0 0
      %535 = vmatpush2.bf16.msra.mxu0 0
      %536 = vmatprep.subr.bf16.mxu0 0
      %537 = vmatpush2.bf16.msra.mxu0 0
      %538 = vmatprep.subr.bf16.mxu0 0
      %539 = vmatpush2.bf16.msra.mxu0 0
      %540 = vmatprep.subr.bf16.mxu0 0
      %541 = vmatpush2.bf16.msra.mxu0 0
      %542 = vmatprep.subr.bf16.mxu0 0
      %543 = vmatpush2.bf16.msra.mxu0 0
      %544 = vmatprep.subr.bf16.mxu0 0
      %545 = vmatpush2.bf16.msra.mxu0 0
      %546 = vmatprep.subr.bf16.mxu0 0
      %547 = vmatpush2.bf16.msra.mxu0 0
      %548 = vmatprep.mubr.bf16.mxu0 0
      %549 = vmatmul.mubr.bf16.gmra.mxu0 %v500
      %v550 = vpop.f32.mrf.mxu0
      %v551 = vadd.f32 0.0, %v550
      %v552 = vpop.f32.mrf.mxu0
      %v553 = vpop.f32.mrf.mxu0
      %v554 = vadd.f32 0.0, %v553
      %v555 = vpop.f32.mrf.mxu0
      %556 = vmatprep.mubr.bf16.mxu0 0
      %557 = vmatmul.mubr.bf16.gmra.mxu0 %v501
      %v558 = vpop.f32.mrf.mxu0
      %v559 = vadd.f32 0.0, %v558
      %v560 = vpop.f32.mrf.mxu0
      %v561 = vpop.f32.mrf.mxu0
      %v562 = vadd.f32 0.0, %v561
      %v563 = vpop.f32.mrf.mxu0
      %564 = vmatprep.mubr.bf16.mxu0 0
      %565 = vmatmul.mubr.bf16.gmra.mxu0 %v502
      %v566 = vpop.f32.mrf.mxu0
      %v567 = vadd.f32 0.0, %v566
      %v568 = vpop.f32.mrf.mxu0
      %v569 = vpop.f32.mrf.mxu0
      %v570 = vadd.f32 0.0, %v569
      %v571 = vpop.f32.mrf.mxu0
      %572 = vmatprep.mubr.bf16.mxu0 0
      %573 = vmatmul.mubr.bf16.gmra.mxu0 %v503
      %v574 = vpop.f32.mrf.mxu0
      %v575 = vadd.f32 0.0, %v574
      %v576 = vpop.f32.mrf.mxu0
      %v577 = vpop.f32.mrf.mxu0
      %v578 = vadd.f32 0.0, %v577
      %v579 = vpop.f32.mrf.mxu0
      %580 = vmatprep.mubr.bf16.mxu0 0
      %581 = vmatmul.mubr.bf16.gmra.mxu0 %v504
      %v582 = vpop.f32.mrf.mxu0
      %v583 = vadd.f32 0.0, %v582
      %v584 = vpop.f32.mrf.mxu0
      %v585 = vpop.f32.mrf.mxu0
      %v586 = vadd.f32 0.0, %v585
      %v587 = vpop.f32.mrf.mxu0
      %588 = vmatprep.mubr.bf16.mxu0 0
      %589 = vmatmul.mubr.bf16.gmra.mxu0 %v505
      %v590 = vpop.f32.mrf.mxu0
      %v591 = vadd.f32 0.0, %v590
      %v592 = vpop.f32.mrf.mxu0
      %v593 = vpop.f32.mrf.mxu0
      %v594 = vadd.f32 0.0, %v593
      %v595 = vpop.f32.mrf.mxu0
      %596 = vmatprep.mubr.bf16.mxu0 0
      %597 = vmatmul.mubr.bf16.gmra.mxu0 %v506
      %v598 = vpop.f32.mrf.mxu0
      %v599 = vadd.f32 0.0, %v598
      %v600 = vpop.f32.mrf.mxu0
      %v601 = vpop.f32.mrf.mxu0
      %v602 = vadd.f32 0.0, %v601
      %v603 = vpop.f32.mrf.mxu0
      %604 = vmatprep.mubr.bf16.mxu0 0
      %605 = vmatmul.mubr.bf16.gmra.mxu0 %v507
      %v606 = vpop.f32.mrf.mxu0
      %v607 = vadd.f32 0.0, %v606
      %v608 = vpop.f32.mrf.mxu0
      %v609 = vpop.f32.mrf.mxu0
      %v610 = vadd.f32 0.0, %v609
      %v611 = vpop.f32.mrf.mxu0
      %612 = vdwg.mxu0
      %p613 = scmp.lt.s32.totalorder %s15, 2
      // Predicated region
      $region71: #{gcn_c_forward.1} parent=31 // pred_check
        %p614 = pneg %p613
      $region72: #{gcn_c_forward.1} parent=31 // pred_check_branch
        %616 = sbr.rel (%p614) target = $region74
      $region73: #{gcn_c_forward.1} parent=31 // pred_region
        %v617 = vmax.f32 %v551, 0.0
        %v618 = vmax.f32 %v554, 0.0
        %v619 = vmax.f32 %v559, 0.0
        %v620 = vmax.f32 %v562, 0.0
        %v621 = vmax.f32 %v567, 0.0
        %v622 = vmax.f32 %v570, 0.0
        %v623 = vmax.f32 %v575, 0.0
        %v624 = vmax.f32 %v578, 0.0
        %v625 = vmax.f32 %v583, 0.0
        %v626 = vmax.f32 %v586, 0.0
        %v627 = vmax.f32 %v591, 0.0
        %v628 = vmax.f32 %v594, 0.0
        %v629 = vmax.f32 %v599, 0.0
        %v630 = vmax.f32 %v602, 0.0
        %v631 = vmax.f32 %v607, 0.0
        %v632 = vmax.f32 %v610, 0.0
        %633 = vst [vmem:[#allocation2] sm:$0xff] %v617
        %634 = vst [vmem:[#allocation2 + $0x8] sm:$0xff] %v618
        %635 = vst [vmem:[#allocation2 + $0x10] sm:$0xff] %v619
        %636 = vst [vmem:[#allocation2 + $0x18] sm:$0xff] %v620
        %637 = vst [vmem:[#allocation2 + $0x20] sm:$0xff] %v621
        %638 = vst [vmem:[#allocation2 + $0x28] sm:$0xff] %v622
        %639 = vst [vmem:[#allocation2 + $0x30] sm:$0xff] %v623
        %640 = vst [vmem:[#allocation2 + $0x38] sm:$0xff] %v624
        %641 = vst [vmem:[#allocation2 + $0x40] sm:$0xff] %v625
        %642 = vst [vmem:[#allocation2 + $0x48] sm:$0xff] %v626
        %643 = vst [vmem:[#allocation2 + $0x50] sm:$0xff] %v627
        %644 = vst [vmem:[#allocation2 + $0x58] sm:$0xff] %v628
        %645 = vst [vmem:[#allocation2 + $0x60] sm:$0xff] %v629
        %646 = vst [vmem:[#allocation2 + $0x68] sm:$0xff] %v630
        %647 = vst [vmem:[#allocation2 + $0x70] sm:$0xff] %v631
        %648 = vst [vmem:[#allocation2 + $0x78] sm:$0xff] %v632
      $region74: #{gcn_c_forward.1} parent=31 // pred_fallthru
        _
      %p649 = scmp.eq.s32.totalorder %s15, 2
      // Predicated region
      $region75: #{gcn_c_forward.1} parent=31 // pred_check
        %p650 = pneg %p649
      $region76: #{gcn_c_forward.1} parent=31 // pred_check_branch
        %652 = sbr.rel (%p650) target = $region78
      $region77: #{gcn_c_forward.1} parent=31 // pred_region
        %653 = vst [vmem:[%s4] sm:$0xff] %v551
        %654 = vst [vmem:[%s4 + $0x8] sm:$0xff] %v554
        %655 = vst [vmem:[%s4 + $0x10] sm:$0xff] %v559
        %656 = vst [vmem:[%s4 + $0x18] sm:$0xff] %v562
        %657 = vst [vmem:[%s4 + $0x20] sm:$0xff] %v567
        %658 = vst [vmem:[%s4 + $0x28] sm:$0xff] %v570
        %659 = vst [vmem:[%s4 + $0x30] sm:$0xff] %v575
        %660 = vst [vmem:[%s4 + $0x38] sm:$0xff] %v578
        %661 = vst [vmem:[%s4 + $0x40] sm:$0xff] %v583
        %662 = vst [vmem:[%s4 + $0x48] sm:$0xff] %v586
        %663 = vst [vmem:[%s4 + $0x50] sm:$0xff] %v591
        %664 = vst [vmem:[%s4 + $0x58] sm:$0xff] %v594
        %665 = vst [vmem:[%s4 + $0x60] sm:$0xff] %v599
        %666 = vst [vmem:[%s4 + $0x68] sm:$0xff] %v602
        %667 = vst [vmem:[%s4 + $0x70] sm:$0xff] %v607
        %668 = vst [vmem:[%s4 + $0x78] sm:$0xff] %v610
      $region78: #{gcn_c_forward.1} parent=31 // pred_fallthru
        _
      // Predicated region
      $region79: #{gcn_c_forward.1} parent=31 // pred_check
        %p669 = pneg %p101
      $region80: #{gcn_c_forward.1} parent=31 // pred_check_branch
        %671 = sbr.rel (%p669) target = $region82
      $region81: #{gcn_c_forward.1} parent=31 // pred_region
        _
      $region82: #{gcn_c_forward.1} parent=31 // pred_fallthru
        _
      // Predicated region
      $region83: #{gcn_c_forward.1} parent=31 // pred_check
        %p672 = pneg %p101
      $region84: #{gcn_c_forward.1} parent=31 // pred_check_branch
        %674 = sbr.rel (%p672) target = $region86
      $region85: #{gcn_c_forward.1} parent=31 // pred_region
        _
      $region86: #{gcn_c_forward.1} parent=31 // pred_fallthru
        _
    $region32: #{gcn_c_forward.1} parent=5 // pred_fallthru
      _
    %p675 = scmp.le.s32.totalorder 2, %s10
    // Predicated region
    $region87: #{gcn_c_forward.1} parent=5 // pred_check
      %p676 = pneg %p675
    $region88: #{gcn_c_forward.1} parent=5 // pred_check_branch
      %678 = sbr.rel (%p676) target = $region90
    $region89: #{gcn_c_forward.1} parent=5 // pred_region
      %s679 = ssub.s32 %s10, 2
    $region90: #{gcn_c_forward.1} parent=5 // pred_fallthru
      _
  $region6: #{gcn_c_forward.1} parent=0 // loop_footer
    %s14 = sadd.s32 1, %s10
  $region7: #{gcn_c_forward.1} parent=0 // loop_footer_branch
    %9 = sbr.rel target = $region3
  $region8: #{gcn_c_forward.1} parent=0 // loop_exit
    _
  %680 = vsyncmov [#allocation3]
  %s681 = vpop.sfrf %680
  %p682 = scmp.eq.s32.totalorder %s681, 0
  %p683 = pneg %p682
  %685 = shalt.err (%p683)

</llo_original>
